<compile_context>
chip_gen: v5e
topology: v5e:2x2
jax: 0.10.0
libtpu: 0.0.40
codegen_flags: <defaults>
</compile_context>

<pallas_src>
import functools

import numpy as np
import jax
import jax.numpy as jnp
from jax.experimental import pallas as pl
from jax.experimental.pallas import tpu as pltpu


def _upsample_matrix(n_in: int, n_out: int) -> jnp.ndarray:
    """(n_out, n_in) 1-D bilinear interpolation matrix, align_corners=True."""
    i = np.arange(n_out, dtype=np.float64)
    if n_out > 1 and n_in > 1:
        src = i * (n_in - 1) / (n_out - 1)
    else:
        src = np.zeros_like(i)
    h0 = np.clip(np.floor(src).astype(np.int64), 0, n_in - 1)
    h1 = np.minimum(h0 + 1, n_in - 1)
    frac = src - h0
    rows = np.arange(n_out)
    R = np.zeros((n_out, n_in), np.float32)
    R[rows, h0] += (1.0 - frac)
    R[rows, h1] += frac
    return jnp.asarray(R)


def _lerp_coeffs(n_in: int, n_out: int):
    """Static (h0, h1, frac) per output row, align_corners=True (Python scalars)."""
    h0s, h1s, fs = [], [], []
    for g in range(n_out):
        if n_out > 1 and n_in > 1:
            src = g * (n_in - 1) / (n_out - 1)
        else:
            src = 0.0
        h0 = min(int(np.floor(src)), n_in - 1)
        h1 = min(h0 + 1, n_in - 1)
        h0s.append(int(h0))
        h1s.append(int(h1))
        fs.append(float(src - h0))
    return tuple(h0s), tuple(h1s), tuple(fs)


def famca_kernel(x_ref, rwt_ref, wc_ref, w1_ref, w2_ref, o_ref, up_ref,
                 *, C, H, W, h0s, h1s, fracs):
    # x_ref  : (1, C*H, W)   bf16, per-batch block (NCHW with H merged into rows)
    # rwt_ref: (W, W2)       bf16, width interpolation matrix transposed
    # wc_ref : (C, C)        bf16, 1x1 conv weight (out_ch, in_ch)
    # w1_ref : (C//4, C)     f32, fc1 weight
    # w2_ref : (C, C//4)     f32, fc2 weight
    # o_ref  : (1, C, H2*W2) output block, lane-dense flattened spatial
    # up_ref : (C, H2*W2)    f32 VMEM scratch (upsampled, pre-conv slab)
    H2, W2 = 2 * H, 2 * W
    f32, bf16 = jnp.float32, jnp.bfloat16

    # --- Width upsample: one MXU matmul on the whole slab (bf16 in, f32 acc).
    xw = jnp.dot(x_ref[0], rwt_ref[...], preferred_element_type=f32)  # (C*H, W2)
    # Free view split (H % 8 == 0 keeps the (8,128) tiling identical).
    xw3 = xw.reshape(C, H, W2)

    # --- Height upsample: static f32 VPU lerps, written straight into the
    #     lane-dense flat slab (this IS the single final relayout / funnel).
    for g in range(H2):
        h0, h1, f = h0s[g], h1s[g], fracs[g]
        r0 = xw3[:, h0, :]                                            # (C, W2)
        if f <= 0.0:
            row = r0
        else:
            row = r0 * (1.0 - f) + xw3[:, h1, :] * f
        up_ref[:, g * W2:(g + 1) * W2] = row

    # --- 1x1 conv on the flattened high-res slab (commutes with the linear
    #     upsample); weights pre-cast to bf16 in the wrapper, f32 accumulation.
    zc = jnp.dot(wc_ref[...], up_ref[...].astype(bf16),
                 preferred_element_type=f32)                          # (C, H2*W2)
    zc = jnp.maximum(zc, 0.0)                                         # ReLU

    # --- Global average pool: one cross-lane reduce per channel row.
    y = jnp.sum(zc, axis=1, keepdims=True) * (1.0 / float(H2 * W2))   # (C, 1)

    # --- SE gate: Linear -> ReLU -> Linear -> Sigmoid (tiny; f32).
    h = jnp.maximum(jnp.dot(w1_ref[...], y, preferred_element_type=f32), 0.0)
    s = jax.nn.sigmoid(jnp.dot(w2_ref[...], h, preferred_element_type=f32))

    # --- Channel-wise rescale; lane-dense store of the flattened output block.
    o_ref[0] = (zc * s).astype(o_ref.dtype)


@jax.jit
def famca_single(x_nchw, w_conv, w_fc1, w_fc2):
    """x_nchw: (B, C, H, W); w_conv: (C, C); w_fc1: (C//4, C); w_fc2: (C, C//4).
    Returns (B, C, 2H, 2W), matching FAMCA_Single.forward."""
    B, C, H, W = x_nchw.shape
    assert C % 4 == 0, "fc reduction needs C % 4 == 0"
    # H % 8 == 0 keeps the in-kernel (C*H, W2) -> (C, H, W2) view free of a
    # relayout; other H still compile/run correctly, just slower.
    H2, W2 = 2 * H, 2 * W
    bf16 = jnp.bfloat16

    # Grid-invariant operands pre-cast once in the wrapper (no per-step casts,
    # halved input DMA). FC weights stay f32 (tiny, keeps gate accuracy).
    rwt = _upsample_matrix(W, W2).T.astype(bf16)          # (W, W2)
    wc = w_conv.astype(bf16)                              # (C, C)
    h0s, h1s, fracs = _lerp_coeffs(H, H2)

    # Free contiguous HBM reshape: NCHW with H merged into the row dim.
    x = x_nchw.reshape(B, C * H, W).astype(bf16)

    kern = functools.partial(famca_kernel, C=C, H=H, W=W,
                             h0s=h0s, h1s=h1s, fracs=fracs)

    # Per-step VMEM footprint: double-buffered in/out blocks + xw + scratch +
    # live conv output + weights; 1.5x headroom, clamped for v7x safety.
    per_step = (2 * (C * H * W * 2 + C * H2 * W2 * 4)
                + C * H * W2 * 4
                + 2 * C * H2 * W2 * 4
                + C * C * 2 + W * W2 * 2 + (C * C // 2) * 4)
    vmem_limit = int(min(max(per_step * 3 // 2, 16 << 20), 48 << 20))

    out_flat = pl.pallas_call(
        kern,
        out_shape=jax.ShapeDtypeStruct((B, C, H2 * W2), x_nchw.dtype),
        grid_spec=pltpu.PrefetchScalarGridSpec(
            num_scalar_prefetch=0,
            grid=(B,),
            in_specs=[
                pl.BlockSpec((1, C * H, W), lambda b: (b, 0, 0)),
                pl.BlockSpec((W, W2), lambda b: (0, 0)),
                pl.BlockSpec((C, C), lambda b: (0, 0)),
                pl.BlockSpec((C // 4, C), lambda b: (0, 0)),
                pl.BlockSpec((C, C // 4), lambda b: (0, 0)),
            ],
            out_specs=pl.BlockSpec((1, C, H2 * W2), lambda b: (b, 0, 0)),
            scratch_shapes=[pltpu.VMEM((C, H2 * W2), jnp.float32)],
        ),
        compiler_params=pltpu.CompilerParams(
            dimension_semantics=("parallel",),
            vmem_limit_bytes=vmem_limit,
        ),
    )(x, rwt, wc, w_fc1, w_fc2)

    # Free contiguous HBM reshape back to NCHW.
    return out_flat.reshape(B, C, H2, W2)


def famca_ref(x_nchw, w_conv, w_fc1, w_fc2):
    """Pure-JAX f32 reference mirroring the PyTorch forward."""
    B, C, H, W = x_nchw.shape
    Rh = _upsample_matrix(H, 2 * H)
    Rw = _upsample_matrix(W, 2 * W)
    up = jnp.einsum("ih,jw,bchw->bcij", Rh, Rw, x_nchw)
    z = jnp.maximum(jnp.einsum("oc,bcij->boij", w_conv, up), 0.0)
    y = jnp.mean(z, axis=(2, 3))
    h = jnp.maximum(y @ w_fc1.T, 0.0)
    s = jax.nn.sigmoid(h @ w_fc2.T)
    return z * s[:, :, None, None]


if __name__ == "__main__":
    key = jax.random.PRNGKey(0)
    B, C, H, W = 2, 8, 16, 16                    # small shapes; C % 4 == 0
    k1, k2, k3, k4 = jax.random.split(key, 4)

    x = jax.random.normal(k1, (B, C, H, W), jnp.float32)
    # Parameter shapes match the nn.Module layers actually used in forward():
    w_conv = jax.random.normal(k2, (C, C), jnp.float32) * 0.1        # Conv2d(C, C, 1, bias=False)
    w_fc1 = jax.random.normal(k3, (C // 4, C), jnp.float32) * 0.1    # Linear(C, C//4, bias=False)
    w_fc2 = jax.random.normal(k4, (C, C // 4), jnp.float32) * 0.1    # Linear(C//4, C, bias=False)

    out = jax.block_until_ready(famca_single(x, w_conv, w_fc1, w_fc2))
    ref = famca_ref(x, w_conv, w_fc1, w_fc2)

    assert out.shape == (B, C, 2 * H, 2 * W), out.shape
    # bf16 MXU operands (f32 accumulation) -> loose-but-meaningful tolerance;
    # a structural bug would produce O(1) errors.
    max_err = float(jnp.max(jnp.abs(out - ref)))
    assert jnp.allclose(out, ref, atol=5e-2, rtol=5e-2), f"max_err={max_err}"

    print("KERNEL_OK")
</pallas_src>

<mosaic_0001>
module attributes {stable_mosaic.version = 11 : i64} {
  func.func @famca_kernel(%arg0: i32, %arg1: memref<1x128x16xbf16, #tpu.memory_space<vmem>>, %arg2: memref<16x32xbf16, #tpu.memory_space<vmem>>, %arg3: memref<8x8xbf16, #tpu.memory_space<vmem>>, %arg4: memref<2x8xf32, #tpu.memory_space<vmem>>, %arg5: memref<8x2xf32, #tpu.memory_space<vmem>>, %arg6: memref<1x8x1024xf32, #tpu.memory_space<vmem>>, %arg7: memref<8x1024xf32, #tpu.memory_space<vmem>>) attributes {dimension_semantics = [#tpu.dimension_semantics<parallel>], iteration_bounds = array<i64: 2>, scalar_prefetch = 0 : i64, scratch_operands = 1 : i64, tpu.core_type = #tpu.core_type<tc>, window_params = [{transform_indices = @transform_0, window_bounds = array<i64: 1, 128, 16>}, {pipeline_mode = #tpu.pipeline_mode<synchronous>, transform_indices = @transform_1, window_bounds = array<i64: 16, 32>}, {pipeline_mode = #tpu.pipeline_mode<synchronous>, transform_indices = @transform_2, window_bounds = array<i64: 8, 8>}, {pipeline_mode = #tpu.pipeline_mode<synchronous>, transform_indices = @transform_3, window_bounds = array<i64: 2, 8>}, {pipeline_mode = #tpu.pipeline_mode<synchronous>, transform_indices = @transform_4, window_bounds = array<i64: 8, 2>}, {transform_indices = @transform_5, window_bounds = array<i64: 1, 8, 1024>}]} {
    %c0 = arith.constant 0 : index
    %c0_0 = arith.constant 0 : index
    %c0_1 = arith.constant 0 : index
    %0 = vector.load %arg1[%c0, %c0_0, %c0_1] : memref<1x128x16xbf16, #tpu.memory_space<vmem>>, vector<1x128x16xbf16>
    %1 = vector.shape_cast %0 : vector<1x128x16xbf16> to vector<128x16xbf16>
    %c0_2 = arith.constant 0 : index
    %c0_3 = arith.constant 0 : index
    %2 = vector.load %arg2[%c0_2, %c0_3] : memref<16x32xbf16, #tpu.memory_space<vmem>>, vector<16x32xbf16>
    %cst = arith.constant dense<0.000000e+00> : vector<128x32xf32>
    %3 = tpu.matmul %1, %2, %cst {dimension_numbers = #tpu.dot_dimension_numbers<[1], [0], [0], [1], [0, 0, 1, 1], [], []>} : vector<128x16xbf16>, vector<16x32xbf16>, vector<128x32xf32> -> vector<128x32xf32>
    %4 = vector.shape_cast %3 : vector<128x32xf32> to vector<8x16x32xf32>
    %5 = vector.extract_strided_slice %4 {offsets = [0, 0, 0], sizes = [8, 1, 32], strides = [1, 1, 1]} : vector<8x16x32xf32> to vector<8x1x32xf32>
    %6 = vector.shape_cast %5 : vector<8x1x32xf32> to vector<8x32xf32>
    %c0_4 = arith.constant 0 : index
    %c0_5 = arith.constant 0 : index
    %7 = vector.load %arg7[%c0_4, %c0_5] : memref<8x1024xf32, #tpu.memory_space<vmem>>, vector<8x32xf32>
    tpu.vector_store %arg7[%c0_4, %c0_5], %6 {strides = array<i32>} : memref<8x1024xf32, #tpu.memory_space<vmem>>, vector<8x32xf32>,
    %8 = vector.extract_strided_slice %4 {offsets = [0, 0, 0], sizes = [8, 1, 32], strides = [1, 1, 1]} : vector<8x16x32xf32> to vector<8x1x32xf32>
    %9 = vector.shape_cast %8 : vector<8x1x32xf32> to vector<8x32xf32>
    %cst_6 = arith.constant 5.161290e-01 : f32
    %10 = vector.broadcast %cst_6 : f32 to vector<8x32xf32>
    %11 = arith.mulf %9, %10 : vector<8x32xf32>
    %12 = vector.extract_strided_slice %4 {offsets = [0, 1, 0], sizes = [8, 1, 32], strides = [1, 1, 1]} : vector<8x16x32xf32> to vector<8x1x32xf32>
    %13 = vector.shape_cast %12 : vector<8x1x32xf32> to vector<8x32xf32>
    %cst_7 = arith.constant 0.483870953 : f32
    %14 = vector.broadcast %cst_7 : f32 to vector<8x32xf32>
    %15 = arith.mulf %13, %14 : vector<8x32xf32>
    %16 = arith.addf %11, %15 : vector<8x32xf32>
    %c0_8 = arith.constant 0 : index
    %c32 = arith.constant 32 : index
    %17 = vector.load %arg7[%c0_8, %c32] : memref<8x1024xf32, #tpu.memory_space<vmem>>, vector<8x32xf32>
    tpu.vector_store %arg7[%c0_8, %c32], %16 {strides = array<i32>} : memref<8x1024xf32, #tpu.memory_space<vmem>>, vector<8x32xf32>,
    %18 = vector.extract_strided_slice %4 {offsets = [0, 0, 0], sizes = [8, 1, 32], strides = [1, 1, 1]} : vector<8x16x32xf32> to vector<8x1x32xf32>
    %19 = vector.shape_cast %18 : vector<8x1x32xf32> to vector<8x32xf32>
    %cst_9 = arith.constant 0.0322580636 : f32
    %20 = vector.broadcast %cst_9 : f32 to vector<8x32xf32>
    %21 = arith.mulf %19, %20 : vector<8x32xf32>
    %22 = vector.extract_strided_slice %4 {offsets = [0, 1, 0], sizes = [8, 1, 32], strides = [1, 1, 1]} : vector<8x16x32xf32> to vector<8x1x32xf32>
    %23 = vector.shape_cast %22 : vector<8x1x32xf32> to vector<8x32xf32>
    %cst_10 = arith.constant 0.967741906 : f32
    %24 = vector.broadcast %cst_10 : f32 to vector<8x32xf32>
    %25 = arith.mulf %23, %24 : vector<8x32xf32>
    %26 = arith.addf %21, %25 : vector<8x32xf32>
    %c0_11 = arith.constant 0 : index
    %c64 = arith.constant 64 : index
    %27 = vector.load %arg7[%c0_11, %c64] : memref<8x1024xf32, #tpu.memory_space<vmem>>, vector<8x32xf32>
    tpu.vector_store %arg7[%c0_11, %c64], %26 {strides = array<i32>} : memref<8x1024xf32, #tpu.memory_space<vmem>>, vector<8x32xf32>,
    %28 = vector.extract_strided_slice %4 {offsets = [0, 1, 0], sizes = [8, 1, 32], strides = [1, 1, 1]} : vector<8x16x32xf32> to vector<8x1x32xf32>
    %29 = vector.shape_cast %28 : vector<8x1x32xf32> to vector<8x32xf32>
    %cst_12 = arith.constant 0.54838711 : f32
    %30 = vector.broadcast %cst_12 : f32 to vector<8x32xf32>
    %31 = arith.mulf %29, %30 : vector<8x32xf32>
    %32 = vector.extract_strided_slice %4 {offsets = [0, 2, 0], sizes = [8, 1, 32], strides = [1, 1, 1]} : vector<8x16x32xf32> to vector<8x1x32xf32>
    %33 = vector.shape_cast %32 : vector<8x1x32xf32> to vector<8x32xf32>
    %cst_13 = arith.constant 0.45161289 : f32
    %34 = vector.broadcast %cst_13 : f32 to vector<8x32xf32>
    %35 = arith.mulf %33, %34 : vector<8x32xf32>
    %36 = arith.addf %31, %35 : vector<8x32xf32>
    %c0_14 = arith.constant 0 : index
    %c96 = arith.constant 96 : index
    %37 = vector.load %arg7[%c0_14, %c96] : memref<8x1024xf32, #tpu.memory_space<vmem>>, vector<8x32xf32>
    tpu.vector_store %arg7[%c0_14, %c96], %36 {strides = array<i32>} : memref<8x1024xf32, #tpu.memory_space<vmem>>, vector<8x32xf32>,
    %38 = vector.extract_strided_slice %4 {offsets = [0, 1, 0], sizes = [8, 1, 32], strides = [1, 1, 1]} : vector<8x16x32xf32> to vector<8x1x32xf32>
    %39 = vector.shape_cast %38 : vector<8x1x32xf32> to vector<8x32xf32>
    %cst_15 = arith.constant 0.0645161271 : f32
    %40 = vector.broadcast %cst_15 : f32 to vector<8x32xf32>
    %41 = arith.mulf %39, %40 : vector<8x32xf32>
    %42 = vector.extract_strided_slice %4 {offsets = [0, 2, 0], sizes = [8, 1, 32], strides = [1, 1, 1]} : vector<8x16x32xf32> to vector<8x1x32xf32>
    %43 = vector.shape_cast %42 : vector<8x1x32xf32> to vector<8x32xf32>
    %cst_16 = arith.constant 0.935483872 : f32
    %44 = vector.broadcast %cst_16 : f32 to vector<8x32xf32>
    %45 = arith.mulf %43, %44 : vector<8x32xf32>
    %46 = arith.addf %41, %45 : vector<8x32xf32>
    %c0_17 = arith.constant 0 : index
    %c128 = arith.constant 128 : index
    %47 = vector.load %arg7[%c0_17, %c128] : memref<8x1024xf32, #tpu.memory_space<vmem>>, vector<8x32xf32>
    tpu.vector_store %arg7[%c0_17, %c128], %46 {strides = array<i32>} : memref<8x1024xf32, #tpu.memory_space<vmem>>, vector<8x32xf32>,
    %48 = vector.extract_strided_slice %4 {offsets = [0, 2, 0], sizes = [8, 1, 32], strides = [1, 1, 1]} : vector<8x16x32xf32> to vector<8x1x32xf32>
    %49 = vector.shape_cast %48 : vector<8x1x32xf32> to vector<8x32xf32>
    %cst_18 = arith.constant 0.580645144 : f32
    %50 = vector.broadcast %cst_18 : f32 to vector<8x32xf32>
    %51 = arith.mulf %49, %50 : vector<8x32xf32>
    %52 = vector.extract_strided_slice %4 {offsets = [0, 3, 0], sizes = [8, 1, 32], strides = [1, 1, 1]} : vector<8x16x32xf32> to vector<8x1x32xf32>
    %53 = vector.shape_cast %52 : vector<8x1x32xf32> to vector<8x32xf32>
    %cst_19 = arith.constant 0.419354826 : f32
    %54 = vector.broadcast %cst_19 : f32 to vector<8x32xf32>
    %55 = arith.mulf %53, %54 : vector<8x32xf32>
    %56 = arith.addf %51, %55 : vector<8x32xf32>
    %c0_20 = arith.constant 0 : index
    %c160 = arith.constant 160 : index
    %57 = vector.load %arg7[%c0_20, %c160] : memref<8x1024xf32, #tpu.memory_space<vmem>>, vector<8x32xf32>
    tpu.vector_store %arg7[%c0_20, %c160], %56 {strides = array<i32>} : memref<8x1024xf32, #tpu.memory_space<vmem>>, vector<8x32xf32>,
    %58 = vector.extract_strided_slice %4 {offsets = [0, 2, 0], sizes = [8, 1, 32], strides = [1, 1, 1]} : vector<8x16x32xf32> to vector<8x1x32xf32>
    %59 = vector.shape_cast %58 : vector<8x1x32xf32> to vector<8x32xf32>
    %cst_21 = arith.constant 0.0967741906 : f32
    %60 = vector.broadcast %cst_21 : f32 to vector<8x32xf32>
    %61 = arith.mulf %59, %60 : vector<8x32xf32>
    %62 = vector.extract_strided_slice %4 {offsets = [0, 3, 0], sizes = [8, 1, 32], strides = [1, 1, 1]} : vector<8x16x32xf32> to vector<8x1x32xf32>
    %63 = vector.shape_cast %62 : vector<8x1x32xf32> to vector<8x32xf32>
    %cst_22 = arith.constant 0.903225779 : f32
    %64 = vector.broadcast %cst_22 : f32 to vector<8x32xf32>
    %65 = arith.mulf %63, %64 : vector<8x32xf32>
    %66 = arith.addf %61, %65 : vector<8x32xf32>
    %c0_23 = arith.constant 0 : index
    %c192 = arith.constant 192 : index
    %67 = vector.load %arg7[%c0_23, %c192] : memref<8x1024xf32, #tpu.memory_space<vmem>>, vector<8x32xf32>
    tpu.vector_store %arg7[%c0_23, %c192], %66 {strides = array<i32>} : memref<8x1024xf32, #tpu.memory_space<vmem>>, vector<8x32xf32>,
    %68 = vector.extract_strided_slice %4 {offsets = [0, 3, 0], sizes = [8, 1, 32], strides = [1, 1, 1]} : vector<8x16x32xf32> to vector<8x1x32xf32>
    %69 = vector.shape_cast %68 : vector<8x1x32xf32> to vector<8x32xf32>
    %cst_24 = arith.constant 0.612903237 : f32
    %70 = vector.broadcast %cst_24 : f32 to vector<8x32xf32>
    %71 = arith.mulf %69, %70 : vector<8x32xf32>
    %72 = vector.extract_strided_slice %4 {offsets = [0, 4, 0], sizes = [8, 1, 32], strides = [1, 1, 1]} : vector<8x16x32xf32> to vector<8x1x32xf32>
    %73 = vector.shape_cast %72 : vector<8x1x32xf32> to vector<8x32xf32>
    %cst_25 = arith.constant 0.387096763 : f32
    %74 = vector.broadcast %cst_25 : f32 to vector<8x32xf32>
    %75 = arith.mulf %73, %74 : vector<8x32xf32>
    %76 = arith.addf %71, %75 : vector<8x32xf32>
    %c0_26 = arith.constant 0 : index
    %c224 = arith.constant 224 : index
    %77 = vector.load %arg7[%c0_26, %c224] : memref<8x1024xf32, #tpu.memory_space<vmem>>, vector<8x32xf32>
    tpu.vector_store %arg7[%c0_26, %c224], %76 {strides = array<i32>} : memref<8x1024xf32, #tpu.memory_space<vmem>>, vector<8x32xf32>,
    %78 = vector.extract_strided_slice %4 {offsets = [0, 3, 0], sizes = [8, 1, 32], strides = [1, 1, 1]} : vector<8x16x32xf32> to vector<8x1x32xf32>
    %79 = vector.shape_cast %78 : vector<8x1x32xf32> to vector<8x32xf32>
    %cst_27 = arith.constant 0.129032254 : f32
    %80 = vector.broadcast %cst_27 : f32 to vector<8x32xf32>
    %81 = arith.mulf %79, %80 : vector<8x32xf32>
    %82 = vector.extract_strided_slice %4 {offsets = [0, 4, 0], sizes = [8, 1, 32], strides = [1, 1, 1]} : vector<8x16x32xf32> to vector<8x1x32xf32>
    %83 = vector.shape_cast %82 : vector<8x1x32xf32> to vector<8x32xf32>
    %cst_28 = arith.constant 0.870967745 : f32
    %84 = vector.broadcast %cst_28 : f32 to vector<8x32xf32>
    %85 = arith.mulf %83, %84 : vector<8x32xf32>
    %86 = arith.addf %81, %85 : vector<8x32xf32>
    %c0_29 = arith.constant 0 : index
    %c256 = arith.constant 256 : index
    %87 = vector.load %arg7[%c0_29, %c256] : memref<8x1024xf32, #tpu.memory_space<vmem>>, vector<8x32xf32>
    tpu.vector_store %arg7[%c0_29, %c256], %86 {strides = array<i32>} : memref<8x1024xf32, #tpu.memory_space<vmem>>, vector<8x32xf32>,
    %88 = vector.extract_strided_slice %4 {offsets = [0, 4, 0], sizes = [8, 1, 32], strides = [1, 1, 1]} : vector<8x16x32xf32> to vector<8x1x32xf32>
    %89 = vector.shape_cast %88 : vector<8x1x32xf32> to vector<8x32xf32>
    %cst_30 = arith.constant 0.645161271 : f32
    %90 = vector.broadcast %cst_30 : f32 to vector<8x32xf32>
    %91 = arith.mulf %89, %90 : vector<8x32xf32>
    %92 = vector.extract_strided_slice %4 {offsets = [0, 5, 0], sizes = [8, 1, 32], strides = [1, 1, 1]} : vector<8x16x32xf32> to vector<8x1x32xf32>
    %93 = vector.shape_cast %92 : vector<8x1x32xf32> to vector<8x32xf32>
    %cst_31 = arith.constant 0.354838699 : f32
    %94 = vector.broadcast %cst_31 : f32 to vector<8x32xf32>
    %95 = arith.mulf %93, %94 : vector<8x32xf32>
    %96 = arith.addf %91, %95 : vector<8x32xf32>
    %c0_32 = arith.constant 0 : index
    %c288 = arith.constant 288 : index
    %97 = vector.load %arg7[%c0_32, %c288] : memref<8x1024xf32, #tpu.memory_space<vmem>>, vector<8x32xf32>
    tpu.vector_store %arg7[%c0_32, %c288], %96 {strides = array<i32>} : memref<8x1024xf32, #tpu.memory_space<vmem>>, vector<8x32xf32>,
    %98 = vector.extract_strided_slice %4 {offsets = [0, 4, 0], sizes = [8, 1, 32], strides = [1, 1, 1]} : vector<8x16x32xf32> to vector<8x1x32xf32>
    %99 = vector.shape_cast %98 : vector<8x1x32xf32> to vector<8x32xf32>
    %cst_33 = arith.constant 0.161290318 : f32
    %100 = vector.broadcast %cst_33 : f32 to vector<8x32xf32>
    %101 = arith.mulf %99, %100 : vector<8x32xf32>
    %102 = vector.extract_strided_slice %4 {offsets = [0, 5, 0], sizes = [8, 1, 32], strides = [1, 1, 1]} : vector<8x16x32xf32> to vector<8x1x32xf32>
    %103 = vector.shape_cast %102 : vector<8x1x32xf32> to vector<8x32xf32>
    %cst_34 = arith.constant 0.838709652 : f32
    %104 = vector.broadcast %cst_34 : f32 to vector<8x32xf32>
    %105 = arith.mulf %103, %104 : vector<8x32xf32>
    %106 = arith.addf %101, %105 : vector<8x32xf32>
    %c0_35 = arith.constant 0 : index
    %c320 = arith.constant 320 : index
    %107 = vector.load %arg7[%c0_35, %c320] : memref<8x1024xf32, #tpu.memory_space<vmem>>, vector<8x32xf32>
    tpu.vector_store %arg7[%c0_35, %c320], %106 {strides = array<i32>} : memref<8x1024xf32, #tpu.memory_space<vmem>>, vector<8x32xf32>,
    %108 = vector.extract_strided_slice %4 {offsets = [0, 5, 0], sizes = [8, 1, 32], strides = [1, 1, 1]} : vector<8x16x32xf32> to vector<8x1x32xf32>
    %109 = vector.shape_cast %108 : vector<8x1x32xf32> to vector<8x32xf32>
    %cst_36 = arith.constant 0.677419364 : f32
    %110 = vector.broadcast %cst_36 : f32 to vector<8x32xf32>
    %111 = arith.mulf %109, %110 : vector<8x32xf32>
    %112 = vector.extract_strided_slice %4 {offsets = [0, 6, 0], sizes = [8, 1, 32], strides = [1, 1, 1]} : vector<8x16x32xf32> to vector<8x1x32xf32>
    %113 = vector.shape_cast %112 : vector<8x1x32xf32> to vector<8x32xf32>
    %cst_37 = arith.constant 0.322580636 : f32
    %114 = vector.broadcast %cst_37 : f32 to vector<8x32xf32>
    %115 = arith.mulf %113, %114 : vector<8x32xf32>
    %116 = arith.addf %111, %115 : vector<8x32xf32>
    %c0_38 = arith.constant 0 : index
    %c352 = arith.constant 352 : index
    %117 = vector.load %arg7[%c0_38, %c352] : memref<8x1024xf32, #tpu.memory_space<vmem>>, vector<8x32xf32>
    tpu.vector_store %arg7[%c0_38, %c352], %116 {strides = array<i32>} : memref<8x1024xf32, #tpu.memory_space<vmem>>, vector<8x32xf32>,
    %118 = vector.extract_strided_slice %4 {offsets = [0, 5, 0], sizes = [8, 1, 32], strides = [1, 1, 1]} : vector<8x16x32xf32> to vector<8x1x32xf32>
    %119 = vector.shape_cast %118 : vector<8x1x32xf32> to vector<8x32xf32>
    %cst_39 = arith.constant 0.193548381 : f32
    %120 = vector.broadcast %cst_39 : f32 to vector<8x32xf32>
    %121 = arith.mulf %119, %120 : vector<8x32xf32>
    %122 = vector.extract_strided_slice %4 {offsets = [0, 6, 0], sizes = [8, 1, 32], strides = [1, 1, 1]} : vector<8x16x32xf32> to vector<8x1x32xf32>
    %123 = vector.shape_cast %122 : vector<8x1x32xf32> to vector<8x32xf32>
    %cst_40 = arith.constant 0.806451618 : f32
    %124 = vector.broadcast %cst_40 : f32 to vector<8x32xf32>
    %125 = arith.mulf %123, %124 : vector<8x32xf32>
    %126 = arith.addf %121, %125 : vector<8x32xf32>
    %c0_41 = arith.constant 0 : index
    %c384 = arith.constant 384 : index
    %127 = vector.load %arg7[%c0_41, %c384] : memref<8x1024xf32, #tpu.memory_space<vmem>>, vector<8x32xf32>
    tpu.vector_store %arg7[%c0_41, %c384], %126 {strides = array<i32>} : memref<8x1024xf32, #tpu.memory_space<vmem>>, vector<8x32xf32>,
    %128 = vector.extract_strided_slice %4 {offsets = [0, 6, 0], sizes = [8, 1, 32], strides = [1, 1, 1]} : vector<8x16x32xf32> to vector<8x1x32xf32>
    %129 = vector.shape_cast %128 : vector<8x1x32xf32> to vector<8x32xf32>
    %cst_42 = arith.constant 0.709677398 : f32
    %130 = vector.broadcast %cst_42 : f32 to vector<8x32xf32>
    %131 = arith.mulf %129, %130 : vector<8x32xf32>
    %132 = vector.extract_strided_slice %4 {offsets = [0, 7, 0], sizes = [8, 1, 32], strides = [1, 1, 1]} : vector<8x16x32xf32> to vector<8x1x32xf32>
    %133 = vector.shape_cast %132 : vector<8x1x32xf32> to vector<8x32xf32>
    %cst_43 = arith.constant 0.290322572 : f32
    %134 = vector.broadcast %cst_43 : f32 to vector<8x32xf32>
    %135 = arith.mulf %133, %134 : vector<8x32xf32>
    %136 = arith.addf %131, %135 : vector<8x32xf32>
    %c0_44 = arith.constant 0 : index
    %c416 = arith.constant 416 : index
    %137 = vector.load %arg7[%c0_44, %c416] : memref<8x1024xf32, #tpu.memory_space<vmem>>, vector<8x32xf32>
    tpu.vector_store %arg7[%c0_44, %c416], %136 {strides = array<i32>} : memref<8x1024xf32, #tpu.memory_space<vmem>>, vector<8x32xf32>,
    %138 = vector.extract_strided_slice %4 {offsets = [0, 6, 0], sizes = [8, 1, 32], strides = [1, 1, 1]} : vector<8x16x32xf32> to vector<8x1x32xf32>
    %139 = vector.shape_cast %138 : vector<8x1x32xf32> to vector<8x32xf32>
    %cst_45 = arith.constant 0.225806445 : f32
    %140 = vector.broadcast %cst_45 : f32 to vector<8x32xf32>
    %141 = arith.mulf %139, %140 : vector<8x32xf32>
    %142 = vector.extract_strided_slice %4 {offsets = [0, 7, 0], sizes = [8, 1, 32], strides = [1, 1, 1]} : vector<8x16x32xf32> to vector<8x1x32xf32>
    %143 = vector.shape_cast %142 : vector<8x1x32xf32> to vector<8x32xf32>
    %cst_46 = arith.constant 0.774193525 : f32
    %144 = vector.broadcast %cst_46 : f32 to vector<8x32xf32>
    %145 = arith.mulf %143, %144 : vector<8x32xf32>
    %146 = arith.addf %141, %145 : vector<8x32xf32>
    %c0_47 = arith.constant 0 : index
    %c448 = arith.constant 448 : index
    %147 = vector.load %arg7[%c0_47, %c448] : memref<8x1024xf32, #tpu.memory_space<vmem>>, vector<8x32xf32>
    tpu.vector_store %arg7[%c0_47, %c448], %146 {strides = array<i32>} : memref<8x1024xf32, #tpu.memory_space<vmem>>, vector<8x32xf32>,
    %148 = vector.extract_strided_slice %4 {offsets = [0, 7, 0], sizes = [8, 1, 32], strides = [1, 1, 1]} : vector<8x16x32xf32> to vector<8x1x32xf32>
    %149 = vector.shape_cast %148 : vector<8x1x32xf32> to vector<8x32xf32>
    %cst_48 = arith.constant 0.741935492 : f32
    %150 = vector.broadcast %cst_48 : f32 to vector<8x32xf32>
    %151 = arith.mulf %149, %150 : vector<8x32xf32>
    %152 = vector.extract_strided_slice %4 {offsets = [0, 8, 0], sizes = [8, 1, 32], strides = [1, 1, 1]} : vector<8x16x32xf32> to vector<8x1x32xf32>
    %153 = vector.shape_cast %152 : vector<8x1x32xf32> to vector<8x32xf32>
    %cst_49 = arith.constant 0.258064508 : f32
    %154 = vector.broadcast %cst_49 : f32 to vector<8x32xf32>
    %155 = arith.mulf %153, %154 : vector<8x32xf32>
    %156 = arith.addf %151, %155 : vector<8x32xf32>
    %c0_50 = arith.constant 0 : index
    %c480 = arith.constant 480 : index
    %157 = vector.load %arg7[%c0_50, %c480] : memref<8x1024xf32, #tpu.memory_space<vmem>>, vector<8x32xf32>
    tpu.vector_store %arg7[%c0_50, %c480], %156 {strides = array<i32>} : memref<8x1024xf32, #tpu.memory_space<vmem>>, vector<8x32xf32>,
    %158 = vector.extract_strided_slice %4 {offsets = [0, 7, 0], sizes = [8, 1, 32], strides = [1, 1, 1]} : vector<8x16x32xf32> to vector<8x1x32xf32>
    %159 = vector.shape_cast %158 : vector<8x1x32xf32> to vector<8x32xf32>
    %cst_51 = arith.constant 0.258064508 : f32
    %160 = vector.broadcast %cst_51 : f32 to vector<8x32xf32>
    %161 = arith.mulf %159, %160 : vector<8x32xf32>
    %162 = vector.extract_strided_slice %4 {offsets = [0, 8, 0], sizes = [8, 1, 32], strides = [1, 1, 1]} : vector<8x16x32xf32> to vector<8x1x32xf32>
    %163 = vector.shape_cast %162 : vector<8x1x32xf32> to vector<8x32xf32>
    %cst_52 = arith.constant 0.741935492 : f32
    %164 = vector.broadcast %cst_52 : f32 to vector<8x32xf32>
    %165 = arith.mulf %163, %164 : vector<8x32xf32>
    %166 = arith.addf %161, %165 : vector<8x32xf32>
    %c0_53 = arith.constant 0 : index
    %c512 = arith.constant 512 : index
    %167 = vector.load %arg7[%c0_53, %c512] : memref<8x1024xf32, #tpu.memory_space<vmem>>, vector<8x32xf32>
    tpu.vector_store %arg7[%c0_53, %c512], %166 {strides = array<i32>} : memref<8x1024xf32, #tpu.memory_space<vmem>>, vector<8x32xf32>,
    %168 = vector.extract_strided_slice %4 {offsets = [0, 8, 0], sizes = [8, 1, 32], strides = [1, 1, 1]} : vector<8x16x32xf32> to vector<8x1x32xf32>
    %169 = vector.shape_cast %168 : vector<8x1x32xf32> to vector<8x32xf32>
    %cst_54 = arith.constant 0.774193525 : f32
    %170 = vector.broadcast %cst_54 : f32 to vector<8x32xf32>
    %171 = arith.mulf %169, %170 : vector<8x32xf32>
    %172 = vector.extract_strided_slice %4 {offsets = [0, 9, 0], sizes = [8, 1, 32], strides = [1, 1, 1]} : vector<8x16x32xf32> to vector<8x1x32xf32>
    %173 = vector.shape_cast %172 : vector<8x1x32xf32> to vector<8x32xf32>
    %cst_55 = arith.constant 0.225806445 : f32
    %174 = vector.broadcast %cst_55 : f32 to vector<8x32xf32>
    %175 = arith.mulf %173, %174 : vector<8x32xf32>
    %176 = arith.addf %171, %175 : vector<8x32xf32>
    %c0_56 = arith.constant 0 : index
    %c544 = arith.constant 544 : index
    %177 = vector.load %arg7[%c0_56, %c544] : memref<8x1024xf32, #tpu.memory_space<vmem>>, vector<8x32xf32>
    tpu.vector_store %arg7[%c0_56, %c544], %176 {strides = array<i32>} : memref<8x1024xf32, #tpu.memory_space<vmem>>, vector<8x32xf32>,
    %178 = vector.extract_strided_slice %4 {offsets = [0, 8, 0], sizes = [8, 1, 32], strides = [1, 1, 1]} : vector<8x16x32xf32> to vector<8x1x32xf32>
    %179 = vector.shape_cast %178 : vector<8x1x32xf32> to vector<8x32xf32>
    %cst_57 = arith.constant 0.290322572 : f32
    %180 = vector.broadcast %cst_57 : f32 to vector<8x32xf32>
    %181 = arith.mulf %179, %180 : vector<8x32xf32>
    %182 = vector.extract_strided_slice %4 {offsets = [0, 9, 0], sizes = [8, 1, 32], strides = [1, 1, 1]} : vector<8x16x32xf32> to vector<8x1x32xf32>
    %183 = vector.shape_cast %182 : vector<8x1x32xf32> to vector<8x32xf32>
    %cst_58 = arith.constant 0.709677398 : f32
    %184 = vector.broadcast %cst_58 : f32 to vector<8x32xf32>
    %185 = arith.mulf %183, %184 : vector<8x32xf32>
    %186 = arith.addf %181, %185 : vector<8x32xf32>
    %c0_59 = arith.constant 0 : index
    %c576 = arith.constant 576 : index
    %187 = vector.load %arg7[%c0_59, %c576] : memref<8x1024xf32, #tpu.memory_space<vmem>>, vector<8x32xf32>
    tpu.vector_store %arg7[%c0_59, %c576], %186 {strides = array<i32>} : memref<8x1024xf32, #tpu.memory_space<vmem>>, vector<8x32xf32>,
    %188 = vector.extract_strided_slice %4 {offsets = [0, 9, 0], sizes = [8, 1, 32], strides = [1, 1, 1]} : vector<8x16x32xf32> to vector<8x1x32xf32>
    %189 = vector.shape_cast %188 : vector<8x1x32xf32> to vector<8x32xf32>
    %cst_60 = arith.constant 0.806451618 : f32
    %190 = vector.broadcast %cst_60 : f32 to vector<8x32xf32>
    %191 = arith.mulf %189, %190 : vector<8x32xf32>
    %192 = vector.extract_strided_slice %4 {offsets = [0, 10, 0], sizes = [8, 1, 32], strides = [1, 1, 1]} : vector<8x16x32xf32> to vector<8x1x32xf32>
    %193 = vector.shape_cast %192 : vector<8x1x32xf32> to vector<8x32xf32>
    %cst_61 = arith.constant 0.193548381 : f32
    %194 = vector.broadcast %cst_61 : f32 to vector<8x32xf32>
    %195 = arith.mulf %193, %194 : vector<8x32xf32>
    %196 = arith.addf %191, %195 : vector<8x32xf32>
    %c0_62 = arith.constant 0 : index
    %c608 = arith.constant 608 : index
    %197 = vector.load %arg7[%c0_62, %c608] : memref<8x1024xf32, #tpu.memory_space<vmem>>, vector<8x32xf32>
    tpu.vector_store %arg7[%c0_62, %c608], %196 {strides = array<i32>} : memref<8x1024xf32, #tpu.memory_space<vmem>>, vector<8x32xf32>,
    %198 = vector.extract_strided_slice %4 {offsets = [0, 9, 0], sizes = [8, 1, 32], strides = [1, 1, 1]} : vector<8x16x32xf32> to vector<8x1x32xf32>
    %199 = vector.shape_cast %198 : vector<8x1x32xf32> to vector<8x32xf32>
    %cst_63 = arith.constant 0.322580636 : f32
    %200 = vector.broadcast %cst_63 : f32 to vector<8x32xf32>
    %201 = arith.mulf %199, %200 : vector<8x32xf32>
    %202 = vector.extract_strided_slice %4 {offsets = [0, 10, 0], sizes = [8, 1, 32], strides = [1, 1, 1]} : vector<8x16x32xf32> to vector<8x1x32xf32>
    %203 = vector.shape_cast %202 : vector<8x1x32xf32> to vector<8x32xf32>
    %cst_64 = arith.constant 0.677419364 : f32
    %204 = vector.broadcast %cst_64 : f32 to vector<8x32xf32>
    %205 = arith.mulf %203, %204 : vector<8x32xf32>
    %206 = arith.addf %201, %205 : vector<8x32xf32>
    %c0_65 = arith.constant 0 : index
    %c640 = arith.constant 640 : index
    %207 = vector.load %arg7[%c0_65, %c640] : memref<8x1024xf32, #tpu.memory_space<vmem>>, vector<8x32xf32>
    tpu.vector_store %arg7[%c0_65, %c640], %206 {strides = array<i32>} : memref<8x1024xf32, #tpu.memory_space<vmem>>, vector<8x32xf32>,
    %208 = vector.extract_strided_slice %4 {offsets = [0, 10, 0], sizes = [8, 1, 32], strides = [1, 1, 1]} : vector<8x16x32xf32> to vector<8x1x32xf32>
    %209 = vector.shape_cast %208 : vector<8x1x32xf32> to vector<8x32xf32>
    %cst_66 = arith.constant 0.838709652 : f32
    %210 = vector.broadcast %cst_66 : f32 to vector<8x32xf32>
    %211 = arith.mulf %209, %210 : vector<8x32xf32>
    %212 = vector.extract_strided_slice %4 {offsets = [0, 11, 0], sizes = [8, 1, 32], strides = [1, 1, 1]} : vector<8x16x32xf32> to vector<8x1x32xf32>
    %213 = vector.shape_cast %212 : vector<8x1x32xf32> to vector<8x32xf32>
    %cst_67 = arith.constant 0.161290318 : f32
    %214 = vector.broadcast %cst_67 : f32 to vector<8x32xf32>
    %215 = arith.mulf %213, %214 : vector<8x32xf32>
    %216 = arith.addf %211, %215 : vector<8x32xf32>
    %c0_68 = arith.constant 0 : index
    %c672 = arith.constant 672 : index
    %217 = vector.load %arg7[%c0_68, %c672] : memref<8x1024xf32, #tpu.memory_space<vmem>>, vector<8x32xf32>
    tpu.vector_store %arg7[%c0_68, %c672], %216 {strides = array<i32>} : memref<8x1024xf32, #tpu.memory_space<vmem>>, vector<8x32xf32>,
    %218 = vector.extract_strided_slice %4 {offsets = [0, 10, 0], sizes = [8, 1, 32], strides = [1, 1, 1]} : vector<8x16x32xf32> to vector<8x1x32xf32>
    %219 = vector.shape_cast %218 : vector<8x1x32xf32> to vector<8x32xf32>
    %cst_69 = arith.constant 0.354838699 : f32
    %220 = vector.broadcast %cst_69 : f32 to vector<8x32xf32>
    %221 = arith.mulf %219, %220 : vector<8x32xf32>
    %222 = vector.extract_strided_slice %4 {offsets = [0, 11, 0], sizes = [8, 1, 32], strides = [1, 1, 1]} : vector<8x16x32xf32> to vector<8x1x32xf32>
    %223 = vector.shape_cast %222 : vector<8x1x32xf32> to vector<8x32xf32>
    %cst_70 = arith.constant 0.645161271 : f32
    %224 = vector.broadcast %cst_70 : f32 to vector<8x32xf32>
    %225 = arith.mulf %223, %224 : vector<8x32xf32>
    %226 = arith.addf %221, %225 : vector<8x32xf32>
    %c0_71 = arith.constant 0 : index
    %c704 = arith.constant 704 : index
    %227 = vector.load %arg7[%c0_71, %c704] : memref<8x1024xf32, #tpu.memory_space<vmem>>, vector<8x32xf32>
    tpu.vector_store %arg7[%c0_71, %c704], %226 {strides = array<i32>} : memref<8x1024xf32, #tpu.memory_space<vmem>>, vector<8x32xf32>,
    %228 = vector.extract_strided_slice %4 {offsets = [0, 11, 0], sizes = [8, 1, 32], strides = [1, 1, 1]} : vector<8x16x32xf32> to vector<8x1x32xf32>
    %229 = vector.shape_cast %228 : vector<8x1x32xf32> to vector<8x32xf32>
    %cst_72 = arith.constant 0.870967745 : f32
    %230 = vector.broadcast %cst_72 : f32 to vector<8x32xf32>
    %231 = arith.mulf %229, %230 : vector<8x32xf32>
    %232 = vector.extract_strided_slice %4 {offsets = [0, 12, 0], sizes = [8, 1, 32], strides = [1, 1, 1]} : vector<8x16x32xf32> to vector<8x1x32xf32>
    %233 = vector.shape_cast %232 : vector<8x1x32xf32> to vector<8x32xf32>
    %cst_73 = arith.constant 0.129032254 : f32
    %234 = vector.broadcast %cst_73 : f32 to vector<8x32xf32>
    %235 = arith.mulf %233, %234 : vector<8x32xf32>
    %236 = arith.addf %231, %235 : vector<8x32xf32>
    %c0_74 = arith.constant 0 : index
    %c736 = arith.constant 736 : index
    %237 = vector.load %arg7[%c0_74, %c736] : memref<8x1024xf32, #tpu.memory_space<vmem>>, vector<8x32xf32>
    tpu.vector_store %arg7[%c0_74, %c736], %236 {strides = array<i32>} : memref<8x1024xf32, #tpu.memory_space<vmem>>, vector<8x32xf32>,
    %238 = vector.extract_strided_slice %4 {offsets = [0, 11, 0], sizes = [8, 1, 32], strides = [1, 1, 1]} : vector<8x16x32xf32> to vector<8x1x32xf32>
    %239 = vector.shape_cast %238 : vector<8x1x32xf32> to vector<8x32xf32>
    %cst_75 = arith.constant 0.387096763 : f32
    %240 = vector.broadcast %cst_75 : f32 to vector<8x32xf32>
    %241 = arith.mulf %239, %240 : vector<8x32xf32>
    %242 = vector.extract_strided_slice %4 {offsets = [0, 12, 0], sizes = [8, 1, 32], strides = [1, 1, 1]} : vector<8x16x32xf32> to vector<8x1x32xf32>
    %243 = vector.shape_cast %242 : vector<8x1x32xf32> to vector<8x32xf32>
    %cst_76 = arith.constant 0.612903237 : f32
    %244 = vector.broadcast %cst_76 : f32 to vector<8x32xf32>
    %245 = arith.mulf %243, %244 : vector<8x32xf32>
    %246 = arith.addf %241, %245 : vector<8x32xf32>
    %c0_77 = arith.constant 0 : index
    %c768 = arith.constant 768 : index
    %247 = vector.load %arg7[%c0_77, %c768] : memref<8x1024xf32, #tpu.memory_space<vmem>>, vector<8x32xf32>
    tpu.vector_store %arg7[%c0_77, %c768], %246 {strides = array<i32>} : memref<8x1024xf32, #tpu.memory_space<vmem>>, vector<8x32xf32>,
    %248 = vector.extract_strided_slice %4 {offsets = [0, 12, 0], sizes = [8, 1, 32], strides = [1, 1, 1]} : vector<8x16x32xf32> to vector<8x1x32xf32>
    %249 = vector.shape_cast %248 : vector<8x1x32xf32> to vector<8x32xf32>
    %cst_78 = arith.constant 0.903225779 : f32
    %250 = vector.broadcast %cst_78 : f32 to vector<8x32xf32>
    %251 = arith.mulf %249, %250 : vector<8x32xf32>
    %252 = vector.extract_strided_slice %4 {offsets = [0, 13, 0], sizes = [8, 1, 32], strides = [1, 1, 1]} : vector<8x16x32xf32> to vector<8x1x32xf32>
    %253 = vector.shape_cast %252 : vector<8x1x32xf32> to vector<8x32xf32>
    %cst_79 = arith.constant 0.0967741906 : f32
    %254 = vector.broadcast %cst_79 : f32 to vector<8x32xf32>
    %255 = arith.mulf %253, %254 : vector<8x32xf32>
    %256 = arith.addf %251, %255 : vector<8x32xf32>
    %c0_80 = arith.constant 0 : index
    %c800 = arith.constant 800 : index
    %257 = vector.load %arg7[%c0_80, %c800] : memref<8x1024xf32, #tpu.memory_space<vmem>>, vector<8x32xf32>
    tpu.vector_store %arg7[%c0_80, %c800], %256 {strides = array<i32>} : memref<8x1024xf32, #tpu.memory_space<vmem>>, vector<8x32xf32>,
    %258 = vector.extract_strided_slice %4 {offsets = [0, 12, 0], sizes = [8, 1, 32], strides = [1, 1, 1]} : vector<8x16x32xf32> to vector<8x1x32xf32>
    %259 = vector.shape_cast %258 : vector<8x1x32xf32> to vector<8x32xf32>
    %cst_81 = arith.constant 0.419354826 : f32
    %260 = vector.broadcast %cst_81 : f32 to vector<8x32xf32>
    %261 = arith.mulf %259, %260 : vector<8x32xf32>
    %262 = vector.extract_strided_slice %4 {offsets = [0, 13, 0], sizes = [8, 1, 32], strides = [1, 1, 1]} : vector<8x16x32xf32> to vector<8x1x32xf32>
    %263 = vector.shape_cast %262 : vector<8x1x32xf32> to vector<8x32xf32>
    %cst_82 = arith.constant 0.580645144 : f32
    %264 = vector.broadcast %cst_82 : f32 to vector<8x32xf32>
    %265 = arith.mulf %263, %264 : vector<8x32xf32>
    %266 = arith.addf %261, %265 : vector<8x32xf32>
    %c0_83 = arith.constant 0 : index
    %c832 = arith.constant 832 : index
    %267 = vector.load %arg7[%c0_83, %c832] : memref<8x1024xf32, #tpu.memory_space<vmem>>, vector<8x32xf32>
    tpu.vector_store %arg7[%c0_83, %c832], %266 {strides = array<i32>} : memref<8x1024xf32, #tpu.memory_space<vmem>>, vector<8x32xf32>,
    %268 = vector.extract_strided_slice %4 {offsets = [0, 13, 0], sizes = [8, 1, 32], strides = [1, 1, 1]} : vector<8x16x32xf32> to vector<8x1x32xf32>
    %269 = vector.shape_cast %268 : vector<8x1x32xf32> to vector<8x32xf32>
    %cst_84 = arith.constant 0.935483872 : f32
    %270 = vector.broadcast %cst_84 : f32 to vector<8x32xf32>
    %271 = arith.mulf %269, %270 : vector<8x32xf32>
    %272 = vector.extract_strided_slice %4 {offsets = [0, 14, 0], sizes = [8, 1, 32], strides = [1, 1, 1]} : vector<8x16x32xf32> to vector<8x1x32xf32>
    %273 = vector.shape_cast %272 : vector<8x1x32xf32> to vector<8x32xf32>
    %cst_85 = arith.constant 0.0645161271 : f32
    %274 = vector.broadcast %cst_85 : f32 to vector<8x32xf32>
    %275 = arith.mulf %273, %274 : vector<8x32xf32>
    %276 = arith.addf %271, %275 : vector<8x32xf32>
    %c0_86 = arith.constant 0 : index
    %c864 = arith.constant 864 : index
    %277 = vector.load %arg7[%c0_86, %c864] : memref<8x1024xf32, #tpu.memory_space<vmem>>, vector<8x32xf32>
    tpu.vector_store %arg7[%c0_86, %c864], %276 {strides = array<i32>} : memref<8x1024xf32, #tpu.memory_space<vmem>>, vector<8x32xf32>,
    %278 = vector.extract_strided_slice %4 {offsets = [0, 13, 0], sizes = [8, 1, 32], strides = [1, 1, 1]} : vector<8x16x32xf32> to vector<8x1x32xf32>
    %279 = vector.shape_cast %278 : vector<8x1x32xf32> to vector<8x32xf32>
    %cst_87 = arith.constant 0.45161289 : f32
    %280 = vector.broadcast %cst_87 : f32 to vector<8x32xf32>
    %281 = arith.mulf %279, %280 : vector<8x32xf32>
    %282 = vector.extract_strided_slice %4 {offsets = [0, 14, 0], sizes = [8, 1, 32], strides = [1, 1, 1]} : vector<8x16x32xf32> to vector<8x1x32xf32>
    %283 = vector.shape_cast %282 : vector<8x1x32xf32> to vector<8x32xf32>
    %cst_88 = arith.constant 0.54838711 : f32
    %284 = vector.broadcast %cst_88 : f32 to vector<8x32xf32>
    %285 = arith.mulf %283, %284 : vector<8x32xf32>
    %286 = arith.addf %281, %285 : vector<8x32xf32>
    %c0_89 = arith.constant 0 : index
    %c896 = arith.constant 896 : index
    %287 = vector.load %arg7[%c0_89, %c896] : memref<8x1024xf32, #tpu.memory_space<vmem>>, vector<8x32xf32>
    tpu.vector_store %arg7[%c0_89, %c896], %286 {strides = array<i32>} : memref<8x1024xf32, #tpu.memory_space<vmem>>, vector<8x32xf32>,
    %288 = vector.extract_strided_slice %4 {offsets = [0, 14, 0], sizes = [8, 1, 32], strides = [1, 1, 1]} : vector<8x16x32xf32> to vector<8x1x32xf32>
    %289 = vector.shape_cast %288 : vector<8x1x32xf32> to vector<8x32xf32>
    %cst_90 = arith.constant 0.967741906 : f32
    %290 = vector.broadcast %cst_90 : f32 to vector<8x32xf32>
    %291 = arith.mulf %289, %290 : vector<8x32xf32>
    %292 = vector.extract_strided_slice %4 {offsets = [0, 15, 0], sizes = [8, 1, 32], strides = [1, 1, 1]} : vector<8x16x32xf32> to vector<8x1x32xf32>
    %293 = vector.shape_cast %292 : vector<8x1x32xf32> to vector<8x32xf32>
    %cst_91 = arith.constant 0.0322580636 : f32
    %294 = vector.broadcast %cst_91 : f32 to vector<8x32xf32>
    %295 = arith.mulf %293, %294 : vector<8x32xf32>
    %296 = arith.addf %291, %295 : vector<8x32xf32>
    %c0_92 = arith.constant 0 : index
    %c928 = arith.constant 928 : index
    %297 = vector.load %arg7[%c0_92, %c928] : memref<8x1024xf32, #tpu.memory_space<vmem>>, vector<8x32xf32>
    tpu.vector_store %arg7[%c0_92, %c928], %296 {strides = array<i32>} : memref<8x1024xf32, #tpu.memory_space<vmem>>, vector<8x32xf32>,
    %298 = vector.extract_strided_slice %4 {offsets = [0, 14, 0], sizes = [8, 1, 32], strides = [1, 1, 1]} : vector<8x16x32xf32> to vector<8x1x32xf32>
    %299 = vector.shape_cast %298 : vector<8x1x32xf32> to vector<8x32xf32>
    %cst_93 = arith.constant 0.483870953 : f32
    %300 = vector.broadcast %cst_93 : f32 to vector<8x32xf32>
    %301 = arith.mulf %299, %300 : vector<8x32xf32>
    %302 = vector.extract_strided_slice %4 {offsets = [0, 15, 0], sizes = [8, 1, 32], strides = [1, 1, 1]} : vector<8x16x32xf32> to vector<8x1x32xf32>
    %303 = vector.shape_cast %302 : vector<8x1x32xf32> to vector<8x32xf32>
    %cst_94 = arith.constant 5.161290e-01 : f32
    %304 = vector.broadcast %cst_94 : f32 to vector<8x32xf32>
    %305 = arith.mulf %303, %304 : vector<8x32xf32>
    %306 = arith.addf %301, %305 : vector<8x32xf32>
    %c0_95 = arith.constant 0 : index
    %c960 = arith.constant 960 : index
    %307 = vector.load %arg7[%c0_95, %c960] : memref<8x1024xf32, #tpu.memory_space<vmem>>, vector<8x32xf32>
    tpu.vector_store %arg7[%c0_95, %c960], %306 {strides = array<i32>} : memref<8x1024xf32, #tpu.memory_space<vmem>>, vector<8x32xf32>,
    %308 = vector.extract_strided_slice %4 {offsets = [0, 15, 0], sizes = [8, 1, 32], strides = [1, 1, 1]} : vector<8x16x32xf32> to vector<8x1x32xf32>
    %309 = vector.shape_cast %308 : vector<8x1x32xf32> to vector<8x32xf32>
    %c0_96 = arith.constant 0 : index
    %c992 = arith.constant 992 : index
    %310 = vector.load %arg7[%c0_96, %c992] : memref<8x1024xf32, #tpu.memory_space<vmem>>, vector<8x32xf32>
    tpu.vector_store %arg7[%c0_96, %c992], %309 {strides = array<i32>} : memref<8x1024xf32, #tpu.memory_space<vmem>>, vector<8x32xf32>,
    %c0_97 = arith.constant 0 : index
    %c0_98 = arith.constant 0 : index
    %311 = vector.load %arg3[%c0_97, %c0_98] : memref<8x8xbf16, #tpu.memory_space<vmem>>, vector<8x8xbf16>
    %c0_99 = arith.constant 0 : index
    %c0_100 = arith.constant 0 : index
    %312 = vector.load %arg7[%c0_99, %c0_100] : memref<8x1024xf32, #tpu.memory_space<vmem>>, vector<8x1024xf32>
    %313 = arith.truncf %312 : vector<8x1024xf32> to vector<8x1024xbf16>
    %cst_101 = arith.constant dense<0.000000e+00> : vector<8x1024xf32>
    %314 = tpu.matmul %311, %313, %cst_101 {dimension_numbers = #tpu.dot_dimension_numbers<[1], [0], [0], [1], [0, 0, 1, 1], [], []>} : vector<8x8xbf16>, vector<8x1024xbf16>, vector<8x1024xf32> -> vector<8x1024xf32>
    %cst_102 = arith.constant 0.000000e+00 : f32
    %315 = vector.broadcast %cst_102 : f32 to vector<8x1024xf32>
    %316 = arith.maximumf %314, %315 : vector<8x1024xf32>
    %cst_103 = arith.constant dense<0.000000e+00> : vector<8xf32>
    %317 = vector.multi_reduction <add>, %316, %cst_103 [1] : vector<8x1024xf32> to vector<8xf32>
    %318 = vector.shape_cast %317 : vector<8xf32> to vector<8x1xf32>
    %cst_104 = arith.constant 9.765625E-4 : f32
    %319 = vector.broadcast %cst_104 : f32 to vector<8x1xf32>
    %320 = arith.mulf %318, %319 : vector<8x1xf32>
    %c0_105 = arith.constant 0 : index
    %c0_106 = arith.constant 0 : index
    %321 = vector.load %arg4[%c0_105, %c0_106] : memref<2x8xf32, #tpu.memory_space<vmem>>, vector<2x8xf32>
    %cst_107 = arith.constant dense<0.000000e+00> : vector<2x1xf32>
    %322 = tpu.matmul %321, %320, %cst_107 {dimension_numbers = #tpu.dot_dimension_numbers<[1], [0], [0], [1], [0, 0, 1, 1], [], []>} : vector<2x8xf32>, vector<8x1xf32>, vector<2x1xf32> -> vector<2x1xf32>
    %cst_108 = arith.constant 0.000000e+00 : f32
    %323 = vector.broadcast %cst_108 : f32 to vector<2x1xf32>
    %324 = arith.maximumf %322, %323 : vector<2x1xf32>
    %c0_109 = arith.constant 0 : index
    %c0_110 = arith.constant 0 : index
    %325 = vector.load %arg5[%c0_109, %c0_110] : memref<8x2xf32, #tpu.memory_space<vmem>>, vector<8x2xf32>
    %cst_111 = arith.constant dense<0.000000e+00> : vector<8x1xf32>
    %326 = tpu.matmul %325, %324, %cst_111 {dimension_numbers = #tpu.dot_dimension_numbers<[1], [0], [0], [1], [0, 0, 1, 1], [], []>} : vector<8x2xf32>, vector<2x1xf32>, vector<8x1xf32> -> vector<8x1xf32>
    %327 = arith.negf %326 : vector<8x1xf32>
    %328 = math.exp %327 : vector<8x1xf32>
    %cst_112 = arith.constant 1.000000e+00 : f32
    %329 = vector.broadcast %cst_112 : f32 to vector<8x1xf32>
    %330 = arith.addf %329, %328 : vector<8x1xf32>
    %331 = arith.divf %329, %330 : vector<8x1xf32>
    %332 = vector.broadcast %331 : vector<8x1xf32> to vector<8x1024xf32>
    %333 = arith.mulf %316, %332 : vector<8x1024xf32>
    %c0_113 = arith.constant 0 : index
    %c0_114 = arith.constant 0 : index
    %c0_115 = arith.constant 0 : index
    %334 = vector.load %arg6[%c0_113, %c0_114, %c0_115] : memref<1x8x1024xf32, #tpu.memory_space<vmem>>, vector<1x8x1024xf32>
    %335 = vector.shape_cast %334 : vector<1x8x1024xf32> to vector<8x1024xf32>
    %336 = vector.shape_cast %333 : vector<8x1024xf32> to vector<1x8x1024xf32>
    tpu.vector_store %arg6[%c0_113, %c0_114, %c0_115], %336 {strides = array<i32>} : memref<1x8x1024xf32, #tpu.memory_space<vmem>>, vector<1x8x1024xf32>,
    return
  }
  func.func @transform_0(%arg0: i32) -> (i32, i32, i32) {
    %c0_i32 = arith.constant 0 : i32
    %c0_i32_0 = arith.constant 0 : i32
    %c0_i32_1 = arith.constant 0 : i32
    return %arg0, %c0_i32, %c0_i32_0 : i32, i32, i32
  }
  func.func @transform_1(%arg0: i32) -> (i32, i32) {
    %c0_i32 = arith.constant 0 : i32
    %c0_i32_0 = arith.constant 0 : i32
    %c0_i32_1 = arith.constant 0 : i32
    return %c0_i32, %c0_i32_0 : i32, i32
  }
  func.func @transform_2(%arg0: i32) -> (i32, i32) {
    %c0_i32 = arith.constant 0 : i32
    %c0_i32_0 = arith.constant 0 : i32
    %c0_i32_1 = arith.constant 0 : i32
    return %c0_i32, %c0_i32_0 : i32, i32
  }
  func.func @transform_3(%arg0: i32) -> (i32, i32) {
    %c0_i32 = arith.constant 0 : i32
    %c0_i32_0 = arith.constant 0 : i32
    %c0_i32_1 = arith.constant 0 : i32
    return %c0_i32, %c0_i32_0 : i32, i32
  }
  func.func @transform_4(%arg0: i32) -> (i32, i32) {
    %c0_i32 = arith.constant 0 : i32
    %c0_i32_0 = arith.constant 0 : i32
    %c0_i32_1 = arith.constant 0 : i32
    return %c0_i32, %c0_i32_0 : i32, i32
  }
  func.func @transform_5(%arg0: i32) -> (i32, i32, i32) {
    %c0_i32 = arith.constant 0 : i32
    %c0_i32_0 = arith.constant 0 : i32
    %c0_i32_1 = arith.constant 0 : i32
    return %arg0, %c0_i32, %c0_i32_0 : i32, i32, i32
  }
}

</mosaic_0001>

<llo_original>
// kernel: famca_single.1
$region0: #{famca_single.1}
  #allocation0 [shape = 'u32[]', space=smem, size = 0x4, offset = 0x4, fixed_abs, tag = 'smem constant byte address 0x4 - core index']
  #allocation1 [shape = 'u32[72,128]{1,0:T(1,128)}', space=vmem, size = 0x9000, scoped, tag = 'internal scratch']
  #allocation2 [shape = 'f32[8,1024]{1,0:T(8,128)}', space=vmem, size = 0x8000, scoped, tag = 'scratch operand']
  %s0 = inlined_call_operand.vmem [shape: bf16[2,128,16], index: 0, kind: input, shape index: {}]
  %s1 = inlined_call_operand.vmem [shape: bf16[16,32], index: 1, kind: input, shape index: {}]
  %s2 = inlined_call_operand.vmem [shape: bf16[8,8], index: 2, kind: input, shape index: {}]
  %s3 = inlined_call_operand.vmem [shape: f32[2,8], index: 3, kind: input, shape index: {}]
  %s4 = inlined_call_operand.vmem [shape: f32[8,2], index: 4, kind: input, shape index: {}]
  %s5 = inlined_call_operand.vmem [shape: f32[2,8,1024], index: 5, kind: output, shape index: {}]
  %s6 = sld [smem:[#allocation0]]
  $region53: #{famca_single.1} parent=0
    _
  %s8 = ssub.s32 1, %s6
  %s9 = scalar_select 0, %s8, %s6
  loop: start=0, step=1, limit=4
  $region2: #{famca_single.1} parent=0 // loop_pre_header
    _
  $region3: #{famca_single.1} parent=0 // loop_header
    %s11 = sphi 0, %s15
    %p12 = scmp.ge.s32.totalorder %s11, 4
    %s21 = sphi 0, %s23
    %s24 = sphi 0, %s21
    %s25 = sphi 0, %s24
    %s41 = sphi 0, %s25
    %s45 = sphi 0, %s45
    %s47 = sphi 0, %s45
    %s48 = sphi 0, %s47
    %s62 = sphi 0, %s48
    %s66 = sphi 0, %s66
    %s68 = sphi 0, %s66
    %s69 = sphi 0, %s68
    %s83 = sphi 0, %s69
    %s87 = sphi 0, %s87
    %s89 = sphi 0, %s87
    %s90 = sphi 0, %s89
    %s104 = sphi 0, %s90
    %s108 = sphi 0, %s108
    %s110 = sphi 0, %s108
    %s111 = sphi 0, %s110
    %s125 = sphi 0, %s111
    %s131 = sphi 0, %s133
    %s134 = sphi 0, %s131
    %s135 = sphi 0, %s134
    %s151 = sphi 0, %s135
  $region4: #{famca_single.1} parent=0 // loop_header_branch
    %14 = sbr.rel (%p12) target = $region8
  $region5: #{famca_single.1} parent=0 // loop_body
    %s16 = ssub.s32 %s11, 1
    %s17 = ssub.s32 %s11, 2
    %s18 = sadd.s32 %s11, 1
    %s19 = ssub.s32 %s11, %s18
    %p20 = scmp.eq.s32.totalorder %s19, 0
    %s22 = sadd.s32 %s21, 1
    %s23 = scalar_select %p20, %s21, %s22
    %p26 = pneg %p20
    %p27 = scmp.eq.s32.totalorder %s11, 1
    %p28 = por %p26, %p27
    %p29 = scmp.ne.s32.totalorder %s21, %s24
    %p30 = scmp.eq.s32.totalorder %s11, 0
    %p31 = por %p29, %p30
    %p32 = scmp.ne.s32.totalorder %s21, %s24
    %p33 = scmp.eq.s32.totalorder %s16, 1
    %p34 = por %p32, %p33
    %p35 = scmp.ne.s32.totalorder %s24, %s25
    %p36 = scmp.eq.s32.totalorder %s16, 0
    %p37 = por %p35, %p36
    %p38 = scmp.ne.s32.totalorder %s24, %s25
    %p39 = scmp.eq.s32.totalorder %s17, 1
    %p40 = por %p38, %p39
    %p42 = scmp.ne.s32.totalorder %s25, %s41
    %p43 = scmp.eq.s32.totalorder %s17, 0
    %p44 = por %p42, %p43
    %s46 = sadd.s32 %s45, 1
    %p49 = scmp.eq.s32.totalorder %s11, 1
    %p50 = scmp.ne.s32.totalorder %s45, %s47
    %p51 = scmp.eq.s32.totalorder %s11, 0
    %p52 = por %p50, %p51
    %p53 = scmp.ne.s32.totalorder %s45, %s47
    %p54 = scmp.eq.s32.totalorder %s16, 1
    %p55 = por %p53, %p54
    %p56 = scmp.ne.s32.totalorder %s47, %s48
    %p57 = scmp.eq.s32.totalorder %s16, 0
    %p58 = por %p56, %p57
    %p59 = scmp.ne.s32.totalorder %s47, %s48
    %p60 = scmp.eq.s32.totalorder %s17, 1
    %p61 = por %p59, %p60
    %p63 = scmp.ne.s32.totalorder %s48, %s62
    %p64 = scmp.eq.s32.totalorder %s17, 0
    %p65 = por %p63, %p64
    %s67 = sadd.s32 %s66, 1
    %p70 = scmp.eq.s32.totalorder %s11, 1
    %p71 = scmp.ne.s32.totalorder %s66, %s68
    %p72 = scmp.eq.s32.totalorder %s11, 0
    %p73 = por %p71, %p72
    %p74 = scmp.ne.s32.totalorder %s66, %s68
    %p75 = scmp.eq.s32.totalorder %s16, 1
    %p76 = por %p74, %p75
    %p77 = scmp.ne.s32.totalorder %s68, %s69
    %p78 = scmp.eq.s32.totalorder %s16, 0
    %p79 = por %p77, %p78
    %p80 = scmp.ne.s32.totalorder %s68, %s69
    %p81 = scmp.eq.s32.totalorder %s17, 1
    %p82 = por %p80, %p81
    %p84 = scmp.ne.s32.totalorder %s69, %s83
    %p85 = scmp.eq.s32.totalorder %s17, 0
    %p86 = por %p84, %p85
    %s88 = sadd.s32 %s87, 1
    %p91 = scmp.eq.s32.totalorder %s11, 1
    %p92 = scmp.ne.s32.totalorder %s87, %s89
    %p93 = scmp.eq.s32.totalorder %s11, 0
    %p94 = por %p92, %p93
    %p95 = scmp.ne.s32.totalorder %s87, %s89
    %p96 = scmp.eq.s32.totalorder %s16, 1
    %p97 = por %p95, %p96
    %p98 = scmp.ne.s32.totalorder %s89, %s90
    %p99 = scmp.eq.s32.totalorder %s16, 0
    %p100 = por %p98, %p99
    %p101 = scmp.ne.s32.totalorder %s89, %s90
    %p102 = scmp.eq.s32.totalorder %s17, 1
    %p103 = por %p101, %p102
    %p105 = scmp.ne.s32.totalorder %s90, %s104
    %p106 = scmp.eq.s32.totalorder %s17, 0
    %p107 = por %p105, %p106
    %s109 = sadd.s32 %s108, 1
    %p112 = scmp.eq.s32.totalorder %s11, 1
    %p113 = scmp.ne.s32.totalorder %s108, %s110
    %p114 = scmp.eq.s32.totalorder %s11, 0
    %p115 = por %p113, %p114
    %p116 = scmp.ne.s32.totalorder %s108, %s110
    %p117 = scmp.eq.s32.totalorder %s16, 1
    %p118 = por %p116, %p117
    %p119 = scmp.ne.s32.totalorder %s110, %s111
    %p120 = scmp.eq.s32.totalorder %s16, 0
    %p121 = por %p119, %p120
    %p122 = scmp.ne.s32.totalorder %s110, %s111
    %p123 = scmp.eq.s32.totalorder %s17, 1
    %p124 = por %p122, %p123
    %p126 = scmp.ne.s32.totalorder %s111, %s125
    %p127 = scmp.eq.s32.totalorder %s17, 0
    %p128 = por %p126, %p127
    %s129 = ssub.s32 %s11, %s18
    %p130 = scmp.eq.s32.totalorder %s129, 0
    %s132 = sadd.s32 %s131, 1
    %s133 = scalar_select %p130, %s131, %s132
    %p136 = pneg %p130
    %p137 = scmp.eq.s32.totalorder %s11, 1
    %p138 = por %p136, %p137
    %p139 = scmp.ne.s32.totalorder %s131, %s134
    %p140 = scmp.eq.s32.totalorder %s11, 0
    %p141 = por %p139, %p140
    %p142 = scmp.ne.s32.totalorder %s131, %s134
    %p143 = scmp.eq.s32.totalorder %s16, 1
    %p144 = por %p142, %p143
    %p145 = scmp.ne.s32.totalorder %s134, %s135
    %p146 = scmp.eq.s32.totalorder %s16, 0
    %p147 = por %p145, %p146
    %p148 = scmp.ne.s32.totalorder %s134, %s135
    %p149 = scmp.eq.s32.totalorder %s17, 1
    %p150 = por %p148, %p149
    %p152 = scmp.ne.s32.totalorder %s135, %s151
    %p153 = scmp.eq.s32.totalorder %s17, 0
    %p154 = por %p152, %p153
    %p155 = scmp.le.s32.totalorder 1, %s11
    %p156 = scmp.lt.s32.totalorder %s11, 3
    %p157 = pnand %p155, %p156
    %p158 = pneg %p157
    // Predicated region
    $region9: #{famca_single.1} parent=5 // pred_check
      _
    $region10: #{famca_single.1} parent=5 // pred_check_branch
      %160 = sbr.rel (%p157) target = $region12
    $region11: #{famca_single.1} parent=5 // pred_region
      %s161 = ssub.s32 %s11, 1
      // Predicated region
      $region13: #{famca_single.1} parent=11 // pred_check
        %p162 = pneg %p58
      $region14: #{famca_single.1} parent=11 // pred_check_branch
        %164 = sbr.rel (%p162) target = $region16
      $region15: #{famca_single.1} parent=11 // pred_region
        _
      $region16: #{famca_single.1} parent=11 // pred_fallthru
        _
      // Predicated region
      $region17: #{famca_single.1} parent=11 // pred_check
        %p165 = pneg %p79
      $region18: #{famca_single.1} parent=11 // pred_check_branch
        %167 = sbr.rel (%p165) target = $region20
      $region19: #{famca_single.1} parent=11 // pred_region
        _
      $region20: #{famca_single.1} parent=11 // pred_fallthru
        _
      // Predicated region
      $region21: #{famca_single.1} parent=11 // pred_check
        %p168 = pneg %p100
      $region22: #{famca_single.1} parent=11 // pred_check_branch
        %170 = sbr.rel (%p168) target = $region24
      $region23: #{famca_single.1} parent=11 // pred_region
        _
      $region24: #{famca_single.1} parent=11 // pred_fallthru
        _
      // Predicated region
      $region25: #{famca_single.1} parent=11 // pred_check
        %p171 = pneg %p121
      $region26: #{famca_single.1} parent=11 // pred_check_branch
        %173 = sbr.rel (%p171) target = $region28
      $region27: #{famca_single.1} parent=11 // pred_region
        _
      $region28: #{famca_single.1} parent=11 // pred_fallthru
        _
    $region12: #{famca_single.1} parent=5 // pred_fallthru
      _
    %p174 = scmp.lt.s32.totalorder %s11, 2
    // Predicated region
    $region29: #{famca_single.1} parent=5 // pred_check
      %p175 = pneg %p174
    $region30: #{famca_single.1} parent=5 // pred_check_branch
      %177 = sbr.rel (%p175) target = $region32
    $region31: #{famca_single.1} parent=5 // pred_region
      // Predicated region
      $region33: #{famca_single.1} parent=31 // pred_check
        %p178 = pneg %p31
      $region34: #{famca_single.1} parent=31 // pred_check_branch
        %180 = sbr.rel (%p178) target = $region36
      $region35: #{famca_single.1} parent=31 // pred_region
        %p181 = scmp.lt.s32.totalorder %s11, 1
        %s182 = scalar_select %p181, %s11, 1
        %s183 = smul.addr %s182, 16
        %s184 = smul.addr %s183, 4
        %s185 = scalar_lea.vmem %s0, %s184
      $region36: #{famca_single.1} parent=31 // pred_fallthru
        _
    $region32: #{famca_single.1} parent=5 // pred_fallthru
      _
    %p186 = scmp.le.s32.totalorder 1, %s11
    %p187 = scmp.lt.s32.totalorder %s11, 3
    %p188 = pnand %p186, %p187
    %p189 = pneg %p188
    // Predicated region
    $region37: #{famca_single.1} parent=5 // pred_check
      _
    $region38: #{famca_single.1} parent=5 // pred_check_branch
      %191 = sbr.rel (%p188) target = $region40
    $region39: #{famca_single.1} parent=5 // pred_region
      %s192 = ssub.s32 %s11, 1
      %p193 = scmp.lt.s32.totalorder %s16, 1
      %s194 = scalar_select %p193, %s16, 1
      %s195 = smul.addr %s194, 16
      %s196 = smul.addr %s195, 4
      %s197 = scalar_lea.vmem %s0, %s196
      %p198 = pneg %p37
      %p199 = pneg %p34
      %p200 = pneg %p58
      %p201 = pneg %p55
      %p202 = pneg %p79
      %p203 = pneg %p76
      %p204 = pneg %p100
      %p205 = pneg %p97
      %p206 = pneg %p121
      %p207 = pneg %p118
      %p208 = pneg %p147
      %p209 = pneg %p144
      %p210 = scmp.lt.s32.totalorder %s16, 1
      %s211 = scalar_select %p210, %s16, 1
      %s212 = smul.addr %s211, 8
      %s213 = smul.addr %s212, 8
      %s214 = scalar_lea.vmem %s5, %s213
      %p215 = scmp.lt.s32.totalorder %s16, 1
      %s216 = scalar_select %p215, %s16, 1
      %s217 = smul.addr %s216, 16
      %s218 = smul.addr %s217, 4
      %s219 = scalar_lea.vmem %s0, %s218
      %p220 = scmp.lt.s32.totalorder %s16, 1
      %s221 = scalar_select %p220, %s16, 1
      %s222 = smul.addr %s221, 8
      %s223 = smul.addr %s222, 8
      %s224 = scalar_lea.vmem %s5, %s223
      %v226 = vld [vmem:[%s219] sm:$0xf]
      %v227 = vld [vmem:[%s219 + $0x4] sm:$0xf]
      %v228 = vld [vmem:[%s219 + $0x8] sm:$0xf]
      %v229 = vld [vmem:[%s219 + $0xc] sm:$0xf]
      %v230 = vld [vmem:[%s219 + $0x10] sm:$0xf]
      %v231 = vld [vmem:[%s219 + $0x14] sm:$0xf]
      %v232 = vld [vmem:[%s219 + $0x18] sm:$0xf]
      %v233 = vld [vmem:[%s219 + $0x1c] sm:$0xf]
      %v234 = vld [vmem:[%s219 + $0x20] sm:$0xf]
      %v235 = vld [vmem:[%s219 + $0x24] sm:$0xf]
      %v236 = vld [vmem:[%s219 + $0x28] sm:$0xf]
      %v237 = vld [vmem:[%s219 + $0x2c] sm:$0xf]
      %v238 = vld [vmem:[%s219 + $0x30] sm:$0xf]
      %v239 = vld [vmem:[%s219 + $0x34] sm:$0xf]
      %v240 = vld [vmem:[%s219 + $0x38] sm:$0xf]
      %v241 = vld [vmem:[%s219 + $0x3c] sm:$0xf]
      %v242 = vld [vmem:[%s1] sm:$0xf]
      %v243 = vld [vmem:[%s1 + $0x4] sm:$0xf]
      %v260 = vunpack.c.l.b16 %v226
      %v261 = vunpack.c.l.b16 %v227
      %v262 = vunpack.c.l.b16 %v228
      %v263 = vunpack.c.l.b16 %v229
      %v264 = vunpack.c.l.b16 %v230
      %v265 = vunpack.c.l.b16 %v231
      %v266 = vunpack.c.l.b16 %v232
      %v267 = vunpack.c.l.b16 %v233
      %v268 = vunpack.c.l.b16 %v234
      %v269 = vunpack.c.l.b16 %v235
      %v270 = vunpack.c.l.b16 %v236
      %v271 = vunpack.c.l.b16 %v237
      %v272 = vunpack.c.l.b16 %v238
      %v273 = vunpack.c.l.b16 %v239
      %v274 = vunpack.c.l.b16 %v240
      %v275 = vunpack.c.l.b16 %v241
      %v276 = vpack.c.b16 %v261, %v260
      %v277 = vpack.c.b16 %v263, %v262
      %v278 = vpack.c.b16 %v265, %v264
      %v279 = vpack.c.b16 %v267, %v266
      %v280 = vpack.c.b16 %v269, %v268
      %v281 = vpack.c.b16 %v271, %v270
      %v282 = vpack.c.b16 %v273, %v272
      %v283 = vpack.c.b16 %v275, %v274
      %v286 = vunpack.c.l.b16 %v242
      %v287 = vunpack.c.l.b16 %v243
      %v288 = vpack.c.b16 %v287, %v286
      %vm290 = vcmask 130048
      %v292 = vsel %vm290, %v276, 0
      %v295 = vsel %vm290, %v277, 0
      %v298 = vsel %vm290, %v278, 0
      %v301 = vsel %vm290, %v279, 0
      %v304 = vsel %vm290, %v280, 0
      %v307 = vsel %vm290, %v281, 0
      %v310 = vsel %vm290, %v282, 0
      %v313 = vsel %vm290, %v283, 0
      %315 = vmatpush.bf16.msra.mxu0 0
      %316 = vmatpush.bf16.msra.mxu0 0
      %317 = vmatpush.bf16.msra.mxu0 0
      %318 = vmatpush.bf16.msra.mxu0 0
      %319 = vmatpush.bf16.msra.mxu0 0
      %320 = vmatpush.bf16.msra.mxu0 0
      %321 = vmatpush.bf16.msra.mxu0 0
      %322 = vmatpush.bf16.msra.mxu0 %v288
      %323 = vmatmul.bf16.gmra.mxu0 %v292
      %v324 = vpop.f32.mrf.mxu0
      %v325 = vadd.f32 0.0, %v324
      %v326 = vpop.f32.mrf.mxu0
      %v327 = vadd.f32 0.0, %v326
      %328 = vmatmul.bf16.gmra.mxu0 %v295
      %v329 = vpop.f32.mrf.mxu0
      %v330 = vadd.f32 0.0, %v329
      %v331 = vpop.f32.mrf.mxu0
      %v332 = vadd.f32 0.0, %v331
      %333 = vmatmul.bf16.gmra.mxu0 %v298
      %v334 = vpop.f32.mrf.mxu0
      %v335 = vadd.f32 0.0, %v334
      %v336 = vpop.f32.mrf.mxu0
      %v337 = vadd.f32 0.0, %v336
      %338 = vmatmul.bf16.gmra.mxu0 %v301
      %v339 = vpop.f32.mrf.mxu0
      %v340 = vadd.f32 0.0, %v339
      %v341 = vpop.f32.mrf.mxu0
      %v342 = vadd.f32 0.0, %v341
      %343 = vmatmul.bf16.gmra.mxu0 %v304
      %v344 = vpop.f32.mrf.mxu0
      %v345 = vadd.f32 0.0, %v344
      %v346 = vpop.f32.mrf.mxu0
      %v347 = vadd.f32 0.0, %v346
      %348 = vmatmul.bf16.gmra.mxu0 %v307
      %v349 = vpop.f32.mrf.mxu0
      %v350 = vadd.f32 0.0, %v349
      %v351 = vpop.f32.mrf.mxu0
      %v352 = vadd.f32 0.0, %v351
      %353 = vmatmul.bf16.gmra.mxu0 %v310
      %v354 = vpop.f32.mrf.mxu0
      %v355 = vadd.f32 0.0, %v354
      %v356 = vpop.f32.mrf.mxu0
      %v357 = vadd.f32 0.0, %v356
      %358 = vmatmul.bf16.gmra.mxu0 %v313
      %v359 = vpop.f32.mrf.mxu0
      %v360 = vadd.f32 0.0, %v359
      %v361 = vpop.f32.mrf.mxu0
      %v362 = vadd.f32 0.0, %v361
      %363 = vdwg.mxu0
      %v372 = vrot.slane %v330, 7
      %vm373 = vcmask 1041409
      %v374 = vsel %vm373, %v372, %v325
      %v375 = vrot.slane %v335, 6
      %vm376 = vcmask 1042434
      %v377 = vsel %vm376, %v375, %v374
      %v378 = vrot.slane %v340, 5
      %vm379 = vcmask 1043459
      %v380 = vsel %vm379, %v378, %v377
      %v381 = vrot.slane %v345, 4
      %vm382 = vcmask 1044484
      %v383 = vsel %vm382, %v381, %v380
      %v384 = vrot.slane %v350, 3
      %vm385 = vcmask 1045509
      %v386 = vsel %vm385, %v384, %v383
      %v387 = vrot.slane %v355, 2
      %vm388 = vcmask 1046534
      %v389 = vsel %vm388, %v387, %v386
      %v390 = vrot.slane %v360, 1
      %vm391 = vcmask 1047559
      %v392 = vsel %vm391, %v390, %v389
      %vm394 = vcmask 261120
      %395 = vst.msk [vmem:[#allocation2] sm:$0xff] %vm394, %v392
      %v396 = vmul.f32 %v325, 0.516129
      %v397 = vmul.f32 %v330, 0.516129
      %v398 = vmul.f32 %v335, 0.516129
      %v399 = vmul.f32 %v340, 0.516129
      %v400 = vmul.f32 %v345, 0.516129
      %v401 = vmul.f32 %v350, 0.516129
      %v402 = vmul.f32 %v355, 0.516129
      %v403 = vmul.f32 %v360, 0.516129
      %v404 = vmul.f32 %v325, 0.48387095
      %v405 = vmul.f32 %v330, 0.48387095
      %v406 = vmul.f32 %v335, 0.48387095
      %v407 = vmul.f32 %v340, 0.48387095
      %v408 = vmul.f32 %v345, 0.48387095
      %v409 = vmul.f32 %v350, 0.48387095
      %v410 = vmul.f32 %v355, 0.48387095
      %v411 = vmul.f32 %v360, 0.48387095
      %v420 = vrot.slane %v404, 1
      %v421 = vrot.slane %v405, 1
      %v422 = vrot.slane %v406, 1
      %v423 = vrot.slane %v407, 1
      %v424 = vrot.slane %v408, 1
      %v425 = vrot.slane %v409, 1
      %v426 = vrot.slane %v410, 1
      %v427 = vrot.slane %v411, 1
      %v436 = vadd.f32 %v396, %v420
      %v437 = vadd.f32 %v397, %v421
      %v438 = vadd.f32 %v398, %v422
      %v439 = vadd.f32 %v399, %v423
      %v440 = vadd.f32 %v400, %v424
      %v441 = vadd.f32 %v401, %v425
      %v442 = vadd.f32 %v402, %v426
      %v443 = vadd.f32 %v403, %v427
      %v452 = vrot.slane %v437, 7
      %v453 = vsel %vm373, %v452, %v436
      %v454 = vrot.slane %v438, 6
      %v455 = vsel %vm376, %v454, %v453
      %v456 = vrot.slane %v439, 5
      %v457 = vsel %vm379, %v456, %v455
      %v458 = vrot.slane %v440, 4
      %v459 = vsel %vm382, %v458, %v457
      %v460 = vrot.slane %v441, 3
      %v461 = vsel %vm385, %v460, %v459
      %v462 = vrot.slane %v442, 2
      %v463 = vsel %vm388, %v462, %v461
      %v464 = vrot.slane %v443, 1
      %v465 = vsel %vm391, %v464, %v463
      %466 = vrot.lane.b32.xlu0 %v465, 32
      %v467 = vpop.permute.xlu0 %466
      %vm469 = vcmask 523520
      %470 = vst.msk [vmem:[#allocation2] sm:$0xff] %vm469, %v467
      %v471 = vmul.f32 %v325, 0.032258064
      %v472 = vmul.f32 %v330, 0.032258064
      %v473 = vmul.f32 %v335, 0.032258064
      %v474 = vmul.f32 %v340, 0.032258064
      %v475 = vmul.f32 %v345, 0.032258064
      %v476 = vmul.f32 %v350, 0.032258064
      %v477 = vmul.f32 %v355, 0.032258064
      %v478 = vmul.f32 %v360, 0.032258064
      %v479 = vmul.f32 %v325, 0.9677419
      %v480 = vmul.f32 %v330, 0.9677419
      %v481 = vmul.f32 %v335, 0.9677419
      %v482 = vmul.f32 %v340, 0.9677419
      %v483 = vmul.f32 %v345, 0.9677419
      %v484 = vmul.f32 %v350, 0.9677419
      %v485 = vmul.f32 %v355, 0.9677419
      %v486 = vmul.f32 %v360, 0.9677419
      %v495 = vrot.slane %v479, 1
      %v496 = vrot.slane %v480, 1
      %v497 = vrot.slane %v481, 1
      %v498 = vrot.slane %v482, 1
      %v499 = vrot.slane %v483, 1
      %v500 = vrot.slane %v484, 1
      %v501 = vrot.slane %v485, 1
      %v502 = vrot.slane %v486, 1
      %v511 = vadd.f32 %v471, %v495
      %v512 = vadd.f32 %v472, %v496
      %v513 = vadd.f32 %v473, %v497
      %v514 = vadd.f32 %v474, %v498
      %v515 = vadd.f32 %v475, %v499
      %v516 = vadd.f32 %v476, %v500
      %v517 = vadd.f32 %v477, %v501
      %v518 = vadd.f32 %v478, %v502
      %v527 = vrot.slane %v512, 7
      %v528 = vsel %vm373, %v527, %v511
      %v529 = vrot.slane %v513, 6
      %v530 = vsel %vm376, %v529, %v528
      %v531 = vrot.slane %v514, 5
      %v532 = vsel %vm379, %v531, %v530
      %v533 = vrot.slane %v515, 4
      %v534 = vsel %vm382, %v533, %v532
      %v535 = vrot.slane %v516, 3
      %v536 = vsel %vm385, %v535, %v534
      %v537 = vrot.slane %v517, 2
      %v538 = vsel %vm388, %v537, %v536
      %v539 = vrot.slane %v518, 1
      %v540 = vsel %vm391, %v539, %v538
      %541 = vrot.lane.b32.xlu0 %v540, 64
      %v542 = vpop.permute.xlu0 %541
      %vm544 = vcmask 785920
      %545 = vst.msk [vmem:[#allocation2] sm:$0xff] %vm544, %v542
      %v546 = vmul.f32 %v325, 0.5483871
      %v547 = vmul.f32 %v330, 0.5483871
      %v548 = vmul.f32 %v335, 0.5483871
      %v549 = vmul.f32 %v340, 0.5483871
      %v550 = vmul.f32 %v345, 0.5483871
      %v551 = vmul.f32 %v350, 0.5483871
      %v552 = vmul.f32 %v355, 0.5483871
      %v553 = vmul.f32 %v360, 0.5483871
      %v554 = vmul.f32 %v325, 0.4516129
      %v555 = vmul.f32 %v330, 0.4516129
      %v556 = vmul.f32 %v335, 0.4516129
      %v557 = vmul.f32 %v340, 0.4516129
      %v558 = vmul.f32 %v345, 0.4516129
      %v559 = vmul.f32 %v350, 0.4516129
      %v560 = vmul.f32 %v355, 0.4516129
      %v561 = vmul.f32 %v360, 0.4516129
      %v570 = vrot.slane %v554, 1
      %v571 = vrot.slane %v555, 1
      %v572 = vrot.slane %v556, 1
      %v573 = vrot.slane %v557, 1
      %v574 = vrot.slane %v558, 1
      %v575 = vrot.slane %v559, 1
      %v576 = vrot.slane %v560, 1
      %v577 = vrot.slane %v561, 1
      %v586 = vadd.f32 %v546, %v570
      %v587 = vadd.f32 %v547, %v571
      %v588 = vadd.f32 %v548, %v572
      %v589 = vadd.f32 %v549, %v573
      %v590 = vadd.f32 %v550, %v574
      %v591 = vadd.f32 %v551, %v575
      %v592 = vadd.f32 %v552, %v576
      %v593 = vadd.f32 %v553, %v577
      %v602 = vrot.slane %v586, 1
      %v603 = vsel %vm373, %v587, %v602
      %v604 = vrot.slane %v588, 7
      %v605 = vsel %vm376, %v604, %v603
      %v606 = vrot.slane %v589, 6
      %v607 = vsel %vm379, %v606, %v605
      %v608 = vrot.slane %v590, 5
      %v609 = vsel %vm382, %v608, %v607
      %v610 = vrot.slane %v591, 4
      %v611 = vsel %vm385, %v610, %v609
      %v612 = vrot.slane %v592, 3
      %v613 = vsel %vm388, %v612, %v611
      %v614 = vrot.slane %v593, 2
      %v615 = vsel %vm391, %v614, %v613
      %616 = vrot.lane.b32.xlu0 %v615, 96
      %v617 = vpop.permute.xlu0 %616
      %vm619 = vcmask 1048320
      %620 = vst.msk [vmem:[#allocation2] sm:$0xff] %vm619, %v617
      %v621 = vmul.f32 %v325, 0.06451613
      %v622 = vmul.f32 %v330, 0.06451613
      %v623 = vmul.f32 %v335, 0.06451613
      %v624 = vmul.f32 %v340, 0.06451613
      %v625 = vmul.f32 %v345, 0.06451613
      %v626 = vmul.f32 %v350, 0.06451613
      %v627 = vmul.f32 %v355, 0.06451613
      %v628 = vmul.f32 %v360, 0.06451613
      %v629 = vmul.f32 %v325, 0.9354839
      %v630 = vmul.f32 %v330, 0.9354839
      %v631 = vmul.f32 %v335, 0.9354839
      %v632 = vmul.f32 %v340, 0.9354839
      %v633 = vmul.f32 %v345, 0.9354839
      %v634 = vmul.f32 %v350, 0.9354839
      %v635 = vmul.f32 %v355, 0.9354839
      %v636 = vmul.f32 %v360, 0.9354839
      %v645 = vrot.slane %v629, 1
      %v646 = vrot.slane %v630, 1
      %v647 = vrot.slane %v631, 1
      %v648 = vrot.slane %v632, 1
      %v649 = vrot.slane %v633, 1
      %v650 = vrot.slane %v634, 1
      %v651 = vrot.slane %v635, 1
      %v652 = vrot.slane %v636, 1
      %v661 = vadd.f32 %v621, %v645
      %v662 = vadd.f32 %v622, %v646
      %v663 = vadd.f32 %v623, %v647
      %v664 = vadd.f32 %v624, %v648
      %v665 = vadd.f32 %v625, %v649
      %v666 = vadd.f32 %v626, %v650
      %v667 = vadd.f32 %v627, %v651
      %v668 = vadd.f32 %v628, %v652
      %v677 = vrot.slane %v661, 1
      %v678 = vsel %vm373, %v662, %v677
      %v679 = vrot.slane %v663, 7
      %v680 = vsel %vm376, %v679, %v678
      %v681 = vrot.slane %v664, 6
      %v682 = vsel %vm379, %v681, %v680
      %v683 = vrot.slane %v665, 5
      %v684 = vsel %vm382, %v683, %v682
      %v685 = vrot.slane %v666, 4
      %v686 = vsel %vm385, %v685, %v684
      %v687 = vrot.slane %v667, 3
      %v688 = vsel %vm388, %v687, %v686
      %v689 = vrot.slane %v668, 2
      %v690 = vsel %vm391, %v689, %v688
      %692 = vst.msk [vmem:[#allocation2 + $0x8] sm:$0xff] %vm394, %v690
      %v693 = vmul.f32 %v325, 0.58064514
      %v694 = vmul.f32 %v330, 0.58064514
      %v695 = vmul.f32 %v335, 0.58064514
      %v696 = vmul.f32 %v340, 0.58064514
      %v697 = vmul.f32 %v345, 0.58064514
      %v698 = vmul.f32 %v350, 0.58064514
      %v699 = vmul.f32 %v355, 0.58064514
      %v700 = vmul.f32 %v360, 0.58064514
      %v701 = vmul.f32 %v325, 0.41935483
      %v702 = vmul.f32 %v330, 0.41935483
      %v703 = vmul.f32 %v335, 0.41935483
      %v704 = vmul.f32 %v340, 0.41935483
      %v705 = vmul.f32 %v345, 0.41935483
      %v706 = vmul.f32 %v350, 0.41935483
      %v707 = vmul.f32 %v355, 0.41935483
      %v708 = vmul.f32 %v360, 0.41935483
      %v717 = vrot.slane %v701, 1
      %v718 = vrot.slane %v702, 1
      %v719 = vrot.slane %v703, 1
      %v720 = vrot.slane %v704, 1
      %v721 = vrot.slane %v705, 1
      %v722 = vrot.slane %v706, 1
      %v723 = vrot.slane %v707, 1
      %v724 = vrot.slane %v708, 1
      %v733 = vadd.f32 %v693, %v717
      %v734 = vadd.f32 %v694, %v718
      %v735 = vadd.f32 %v695, %v719
      %v736 = vadd.f32 %v696, %v720
      %v737 = vadd.f32 %v697, %v721
      %v738 = vadd.f32 %v698, %v722
      %v739 = vadd.f32 %v699, %v723
      %v740 = vadd.f32 %v700, %v724
      %v749 = vrot.slane %v733, 2
      %v750 = vrot.slane %v734, 1
      %v751 = vsel %vm373, %v750, %v749
      %v752 = vsel %vm376, %v735, %v751
      %v753 = vrot.slane %v736, 7
      %v754 = vsel %vm379, %v753, %v752
      %v755 = vrot.slane %v737, 6
      %v756 = vsel %vm382, %v755, %v754
      %v757 = vrot.slane %v738, 5
      %v758 = vsel %vm385, %v757, %v756
      %v759 = vrot.slane %v739, 4
      %v760 = vsel %vm388, %v759, %v758
      %v761 = vrot.slane %v740, 3
      %v762 = vsel %vm391, %v761, %v760
      %763 = vrot.lane.b32.xlu0 %v762, 32
      %v764 = vpop.permute.xlu0 %763
      %766 = vst.msk [vmem:[#allocation2 + $0x8] sm:$0xff] %vm469, %v764
      %v767 = vmul.f32 %v325, 0.09677419
      %v768 = vmul.f32 %v330, 0.09677419
      %v769 = vmul.f32 %v335, 0.09677419
      %v770 = vmul.f32 %v340, 0.09677419
      %v771 = vmul.f32 %v345, 0.09677419
      %v772 = vmul.f32 %v350, 0.09677419
      %v773 = vmul.f32 %v355, 0.09677419
      %v774 = vmul.f32 %v360, 0.09677419
      %v775 = vmul.f32 %v325, 0.9032258
      %v776 = vmul.f32 %v330, 0.9032258
      %v777 = vmul.f32 %v335, 0.9032258
      %v778 = vmul.f32 %v340, 0.9032258
      %v779 = vmul.f32 %v345, 0.9032258
      %v780 = vmul.f32 %v350, 0.9032258
      %v781 = vmul.f32 %v355, 0.9032258
      %v782 = vmul.f32 %v360, 0.9032258
      %v791 = vrot.slane %v775, 1
      %v792 = vrot.slane %v776, 1
      %v793 = vrot.slane %v777, 1
      %v794 = vrot.slane %v778, 1
      %v795 = vrot.slane %v779, 1
      %v796 = vrot.slane %v780, 1
      %v797 = vrot.slane %v781, 1
      %v798 = vrot.slane %v782, 1
      %v807 = vadd.f32 %v767, %v791
      %v808 = vadd.f32 %v768, %v792
      %v809 = vadd.f32 %v769, %v793
      %v810 = vadd.f32 %v770, %v794
      %v811 = vadd.f32 %v771, %v795
      %v812 = vadd.f32 %v772, %v796
      %v813 = vadd.f32 %v773, %v797
      %v814 = vadd.f32 %v774, %v798
      %v823 = vrot.slane %v807, 2
      %v824 = vrot.slane %v808, 1
      %v825 = vsel %vm373, %v824, %v823
      %v826 = vsel %vm376, %v809, %v825
      %v827 = vrot.slane %v810, 7
      %v828 = vsel %vm379, %v827, %v826
      %v829 = vrot.slane %v811, 6
      %v830 = vsel %vm382, %v829, %v828
      %v831 = vrot.slane %v812, 5
      %v832 = vsel %vm385, %v831, %v830
      %v833 = vrot.slane %v813, 4
      %v834 = vsel %vm388, %v833, %v832
      %v835 = vrot.slane %v814, 3
      %v836 = vsel %vm391, %v835, %v834
      %837 = vrot.lane.b32.xlu0 %v836, 64
      %v838 = vpop.permute.xlu0 %837
      %840 = vst.msk [vmem:[#allocation2 + $0x8] sm:$0xff] %vm544, %v838
      %v841 = vmul.f32 %v325, 0.61290324
      %v842 = vmul.f32 %v330, 0.61290324
      %v843 = vmul.f32 %v335, 0.61290324
      %v844 = vmul.f32 %v340, 0.61290324
      %v845 = vmul.f32 %v345, 0.61290324
      %v846 = vmul.f32 %v350, 0.61290324
      %v847 = vmul.f32 %v355, 0.61290324
      %v848 = vmul.f32 %v360, 0.61290324
      %v849 = vmul.f32 %v325, 0.38709676
      %v850 = vmul.f32 %v330, 0.38709676
      %v851 = vmul.f32 %v335, 0.38709676
      %v852 = vmul.f32 %v340, 0.38709676
      %v853 = vmul.f32 %v345, 0.38709676
      %v854 = vmul.f32 %v350, 0.38709676
      %v855 = vmul.f32 %v355, 0.38709676
      %v856 = vmul.f32 %v360, 0.38709676
      %v865 = vrot.slane %v849, 1
      %v866 = vrot.slane %v850, 1
      %v867 = vrot.slane %v851, 1
      %v868 = vrot.slane %v852, 1
      %v869 = vrot.slane %v853, 1
      %v870 = vrot.slane %v854, 1
      %v871 = vrot.slane %v855, 1
      %v872 = vrot.slane %v856, 1
      %v881 = vadd.f32 %v841, %v865
      %v882 = vadd.f32 %v842, %v866
      %v883 = vadd.f32 %v843, %v867
      %v884 = vadd.f32 %v844, %v868
      %v885 = vadd.f32 %v845, %v869
      %v886 = vadd.f32 %v846, %v870
      %v887 = vadd.f32 %v847, %v871
      %v888 = vadd.f32 %v848, %v872
      %v897 = vrot.slane %v881, 3
      %v898 = vrot.slane %v882, 2
      %v899 = vsel %vm373, %v898, %v897
      %v900 = vrot.slane %v883, 1
      %v901 = vsel %vm376, %v900, %v899
      %v902 = vsel %vm379, %v884, %v901
      %v903 = vrot.slane %v885, 7
      %v904 = vsel %vm382, %v903, %v902
      %v905 = vrot.slane %v886, 6
      %v906 = vsel %vm385, %v905, %v904
      %v907 = vrot.slane %v887, 5
      %v908 = vsel %vm388, %v907, %v906
      %v909 = vrot.slane %v888, 4
      %v910 = vsel %vm391, %v909, %v908
      %911 = vrot.lane.b32.xlu0 %v910, 96
      %v912 = vpop.permute.xlu0 %911
      %914 = vst.msk [vmem:[#allocation2 + $0x8] sm:$0xff] %vm619, %v912
      %v915 = vmul.f32 %v325, 0.12903225
      %v916 = vmul.f32 %v330, 0.12903225
      %v917 = vmul.f32 %v335, 0.12903225
      %v918 = vmul.f32 %v340, 0.12903225
      %v919 = vmul.f32 %v345, 0.12903225
      %v920 = vmul.f32 %v350, 0.12903225
      %v921 = vmul.f32 %v355, 0.12903225
      %v922 = vmul.f32 %v360, 0.12903225
      %v923 = vmul.f32 %v325, 0.87096775
      %v924 = vmul.f32 %v330, 0.87096775
      %v925 = vmul.f32 %v335, 0.87096775
      %v926 = vmul.f32 %v340, 0.87096775
      %v927 = vmul.f32 %v345, 0.87096775
      %v928 = vmul.f32 %v350, 0.87096775
      %v929 = vmul.f32 %v355, 0.87096775
      %v930 = vmul.f32 %v360, 0.87096775
      %v939 = vrot.slane %v923, 1
      %v940 = vrot.slane %v924, 1
      %v941 = vrot.slane %v925, 1
      %v942 = vrot.slane %v926, 1
      %v943 = vrot.slane %v927, 1
      %v944 = vrot.slane %v928, 1
      %v945 = vrot.slane %v929, 1
      %v946 = vrot.slane %v930, 1
      %v955 = vadd.f32 %v915, %v939
      %v956 = vadd.f32 %v916, %v940
      %v957 = vadd.f32 %v917, %v941
      %v958 = vadd.f32 %v918, %v942
      %v959 = vadd.f32 %v919, %v943
      %v960 = vadd.f32 %v920, %v944
      %v961 = vadd.f32 %v921, %v945
      %v962 = vadd.f32 %v922, %v946
      %v971 = vrot.slane %v955, 3
      %v972 = vrot.slane %v956, 2
      %v973 = vsel %vm373, %v972, %v971
      %v974 = vrot.slane %v957, 1
      %v975 = vsel %vm376, %v974, %v973
      %v976 = vsel %vm379, %v958, %v975
      %v977 = vrot.slane %v959, 7
      %v978 = vsel %vm382, %v977, %v976
      %v979 = vrot.slane %v960, 6
      %v980 = vsel %vm385, %v979, %v978
      %v981 = vrot.slane %v961, 5
      %v982 = vsel %vm388, %v981, %v980
      %v983 = vrot.slane %v962, 4
      %v984 = vsel %vm391, %v983, %v982
      %986 = vst.msk [vmem:[#allocation2 + $0x10] sm:$0xff] %vm394, %v984
      %v987 = vmul.f32 %v325, 0.6451613
      %v988 = vmul.f32 %v330, 0.6451613
      %v989 = vmul.f32 %v335, 0.6451613
      %v990 = vmul.f32 %v340, 0.6451613
      %v991 = vmul.f32 %v345, 0.6451613
      %v992 = vmul.f32 %v350, 0.6451613
      %v993 = vmul.f32 %v355, 0.6451613
      %v994 = vmul.f32 %v360, 0.6451613
      %v995 = vmul.f32 %v325, 0.3548387
      %v996 = vmul.f32 %v330, 0.3548387
      %v997 = vmul.f32 %v335, 0.3548387
      %v998 = vmul.f32 %v340, 0.3548387
      %v999 = vmul.f32 %v345, 0.3548387
      %v1000 = vmul.f32 %v350, 0.3548387
      %v1001 = vmul.f32 %v355, 0.3548387
      %v1002 = vmul.f32 %v360, 0.3548387
      %v1011 = vrot.slane %v995, 1
      %v1012 = vrot.slane %v996, 1
      %v1013 = vrot.slane %v997, 1
      %v1014 = vrot.slane %v998, 1
      %v1015 = vrot.slane %v999, 1
      %v1016 = vrot.slane %v1000, 1
      %v1017 = vrot.slane %v1001, 1
      %v1018 = vrot.slane %v1002, 1
      %v1027 = vadd.f32 %v987, %v1011
      %v1028 = vadd.f32 %v988, %v1012
      %v1029 = vadd.f32 %v989, %v1013
      %v1030 = vadd.f32 %v990, %v1014
      %v1031 = vadd.f32 %v991, %v1015
      %v1032 = vadd.f32 %v992, %v1016
      %v1033 = vadd.f32 %v993, %v1017
      %v1034 = vadd.f32 %v994, %v1018
      %v1043 = vrot.slane %v1027, 4
      %v1044 = vrot.slane %v1028, 3
      %v1045 = vsel %vm373, %v1044, %v1043
      %v1046 = vrot.slane %v1029, 2
      %v1047 = vsel %vm376, %v1046, %v1045
      %v1048 = vrot.slane %v1030, 1
      %v1049 = vsel %vm379, %v1048, %v1047
      %v1050 = vsel %vm382, %v1031, %v1049
      %v1051 = vrot.slane %v1032, 7
      %v1052 = vsel %vm385, %v1051, %v1050
      %v1053 = vrot.slane %v1033, 6
      %v1054 = vsel %vm388, %v1053, %v1052
      %v1055 = vrot.slane %v1034, 5
      %v1056 = vsel %vm391, %v1055, %v1054
      %1057 = vrot.lane.b32.xlu0 %v1056, 32
      %v1058 = vpop.permute.xlu0 %1057
      %1060 = vst.msk [vmem:[#allocation2 + $0x10] sm:$0xff] %vm469, %v1058
      %v1061 = vmul.f32 %v325, 0.16129032
      %v1062 = vmul.f32 %v330, 0.16129032
      %v1063 = vmul.f32 %v335, 0.16129032
      %v1064 = vmul.f32 %v340, 0.16129032
      %v1065 = vmul.f32 %v345, 0.16129032
      %v1066 = vmul.f32 %v350, 0.16129032
      %v1067 = vmul.f32 %v355, 0.16129032
      %v1068 = vmul.f32 %v360, 0.16129032
      %v1069 = vmul.f32 %v325, 0.83870965
      %v1070 = vmul.f32 %v330, 0.83870965
      %v1071 = vmul.f32 %v335, 0.83870965
      %v1072 = vmul.f32 %v340, 0.83870965
      %v1073 = vmul.f32 %v345, 0.83870965
      %v1074 = vmul.f32 %v350, 0.83870965
      %v1075 = vmul.f32 %v355, 0.83870965
      %v1076 = vmul.f32 %v360, 0.83870965
      %v1085 = vrot.slane %v1069, 1
      %v1086 = vrot.slane %v1070, 1
      %v1087 = vrot.slane %v1071, 1
      %v1088 = vrot.slane %v1072, 1
      %v1089 = vrot.slane %v1073, 1
      %v1090 = vrot.slane %v1074, 1
      %v1091 = vrot.slane %v1075, 1
      %v1092 = vrot.slane %v1076, 1
      %v1101 = vadd.f32 %v1061, %v1085
      %v1102 = vadd.f32 %v1062, %v1086
      %v1103 = vadd.f32 %v1063, %v1087
      %v1104 = vadd.f32 %v1064, %v1088
      %v1105 = vadd.f32 %v1065, %v1089
      %v1106 = vadd.f32 %v1066, %v1090
      %v1107 = vadd.f32 %v1067, %v1091
      %v1108 = vadd.f32 %v1068, %v1092
      %v1117 = vrot.slane %v1101, 4
      %v1118 = vrot.slane %v1102, 3
      %v1119 = vsel %vm373, %v1118, %v1117
      %v1120 = vrot.slane %v1103, 2
      %v1121 = vsel %vm376, %v1120, %v1119
      %v1122 = vrot.slane %v1104, 1
      %v1123 = vsel %vm379, %v1122, %v1121
      %v1124 = vsel %vm382, %v1105, %v1123
      %v1125 = vrot.slane %v1106, 7
      %v1126 = vsel %vm385, %v1125, %v1124
      %v1127 = vrot.slane %v1107, 6
      %v1128 = vsel %vm388, %v1127, %v1126
      %v1129 = vrot.slane %v1108, 5
      %v1130 = vsel %vm391, %v1129, %v1128
      %1131 = vrot.lane.b32.xlu0 %v1130, 64
      %v1132 = vpop.permute.xlu0 %1131
      %1134 = vst.msk [vmem:[#allocation2 + $0x10] sm:$0xff] %vm544, %v1132
      %v1135 = vmul.f32 %v325, 0.67741936
      %v1136 = vmul.f32 %v330, 0.67741936
      %v1137 = vmul.f32 %v335, 0.67741936
      %v1138 = vmul.f32 %v340, 0.67741936
      %v1139 = vmul.f32 %v345, 0.67741936
      %v1140 = vmul.f32 %v350, 0.67741936
      %v1141 = vmul.f32 %v355, 0.67741936
      %v1142 = vmul.f32 %v360, 0.67741936
      %v1143 = vmul.f32 %v325, 0.32258064
      %v1144 = vmul.f32 %v330, 0.32258064
      %v1145 = vmul.f32 %v335, 0.32258064
      %v1146 = vmul.f32 %v340, 0.32258064
      %v1147 = vmul.f32 %v345, 0.32258064
      %v1148 = vmul.f32 %v350, 0.32258064
      %v1149 = vmul.f32 %v355, 0.32258064
      %v1150 = vmul.f32 %v360, 0.32258064
      %v1159 = vrot.slane %v1143, 1
      %v1160 = vrot.slane %v1144, 1
      %v1161 = vrot.slane %v1145, 1
      %v1162 = vrot.slane %v1146, 1
      %v1163 = vrot.slane %v1147, 1
      %v1164 = vrot.slane %v1148, 1
      %v1165 = vrot.slane %v1149, 1
      %v1166 = vrot.slane %v1150, 1
      %v1175 = vadd.f32 %v1135, %v1159
      %v1176 = vadd.f32 %v1136, %v1160
      %v1177 = vadd.f32 %v1137, %v1161
      %v1178 = vadd.f32 %v1138, %v1162
      %v1179 = vadd.f32 %v1139, %v1163
      %v1180 = vadd.f32 %v1140, %v1164
      %v1181 = vadd.f32 %v1141, %v1165
      %v1182 = vadd.f32 %v1142, %v1166
      %v1191 = vrot.slane %v1175, 5
      %v1192 = vrot.slane %v1176, 4
      %v1193 = vsel %vm373, %v1192, %v1191
      %v1194 = vrot.slane %v1177, 3
      %v1195 = vsel %vm376, %v1194, %v1193
      %v1196 = vrot.slane %v1178, 2
      %v1197 = vsel %vm379, %v1196, %v1195
      %v1198 = vrot.slane %v1179, 1
      %v1199 = vsel %vm382, %v1198, %v1197
      %v1200 = vsel %vm385, %v1180, %v1199
      %v1201 = vrot.slane %v1181, 7
      %v1202 = vsel %vm388, %v1201, %v1200
      %v1203 = vrot.slane %v1182, 6
      %v1204 = vsel %vm391, %v1203, %v1202
      %1205 = vrot.lane.b32.xlu0 %v1204, 96
      %v1206 = vpop.permute.xlu0 %1205
      %1208 = vst.msk [vmem:[#allocation2 + $0x10] sm:$0xff] %vm619, %v1206
      %v1209 = vmul.f32 %v325, 0.19354838
      %v1210 = vmul.f32 %v330, 0.19354838
      %v1211 = vmul.f32 %v335, 0.19354838
      %v1212 = vmul.f32 %v340, 0.19354838
      %v1213 = vmul.f32 %v345, 0.19354838
      %v1214 = vmul.f32 %v350, 0.19354838
      %v1215 = vmul.f32 %v355, 0.19354838
      %v1216 = vmul.f32 %v360, 0.19354838
      %v1217 = vmul.f32 %v325, 0.8064516
      %v1218 = vmul.f32 %v330, 0.8064516
      %v1219 = vmul.f32 %v335, 0.8064516
      %v1220 = vmul.f32 %v340, 0.8064516
      %v1221 = vmul.f32 %v345, 0.8064516
      %v1222 = vmul.f32 %v350, 0.8064516
      %v1223 = vmul.f32 %v355, 0.8064516
      %v1224 = vmul.f32 %v360, 0.8064516
      %v1233 = vrot.slane %v1217, 1
      %v1234 = vrot.slane %v1218, 1
      %v1235 = vrot.slane %v1219, 1
      %v1236 = vrot.slane %v1220, 1
      %v1237 = vrot.slane %v1221, 1
      %v1238 = vrot.slane %v1222, 1
      %v1239 = vrot.slane %v1223, 1
      %v1240 = vrot.slane %v1224, 1
      %v1249 = vadd.f32 %v1209, %v1233
      %v1250 = vadd.f32 %v1210, %v1234
      %v1251 = vadd.f32 %v1211, %v1235
      %v1252 = vadd.f32 %v1212, %v1236
      %v1253 = vadd.f32 %v1213, %v1237
      %v1254 = vadd.f32 %v1214, %v1238
      %v1255 = vadd.f32 %v1215, %v1239
      %v1256 = vadd.f32 %v1216, %v1240
      %v1265 = vrot.slane %v1249, 5
      %v1266 = vrot.slane %v1250, 4
      %v1267 = vsel %vm373, %v1266, %v1265
      %v1268 = vrot.slane %v1251, 3
      %v1269 = vsel %vm376, %v1268, %v1267
      %v1270 = vrot.slane %v1252, 2
      %v1271 = vsel %vm379, %v1270, %v1269
      %v1272 = vrot.slane %v1253, 1
      %v1273 = vsel %vm382, %v1272, %v1271
      %v1274 = vsel %vm385, %v1254, %v1273
      %v1275 = vrot.slane %v1255, 7
      %v1276 = vsel %vm388, %v1275, %v1274
      %v1277 = vrot.slane %v1256, 6
      %v1278 = vsel %vm391, %v1277, %v1276
      %1280 = vst.msk [vmem:[#allocation2 + $0x18] sm:$0xff] %vm394, %v1278
      %v1281 = vmul.f32 %v325, 0.7096774
      %v1282 = vmul.f32 %v330, 0.7096774
      %v1283 = vmul.f32 %v335, 0.7096774
      %v1284 = vmul.f32 %v340, 0.7096774
      %v1285 = vmul.f32 %v345, 0.7096774
      %v1286 = vmul.f32 %v350, 0.7096774
      %v1287 = vmul.f32 %v355, 0.7096774
      %v1288 = vmul.f32 %v360, 0.7096774
      %v1289 = vmul.f32 %v325, 0.29032257
      %v1290 = vmul.f32 %v330, 0.29032257
      %v1291 = vmul.f32 %v335, 0.29032257
      %v1292 = vmul.f32 %v340, 0.29032257
      %v1293 = vmul.f32 %v345, 0.29032257
      %v1294 = vmul.f32 %v350, 0.29032257
      %v1295 = vmul.f32 %v355, 0.29032257
      %v1296 = vmul.f32 %v360, 0.29032257
      %v1305 = vrot.slane %v1289, 1
      %v1306 = vrot.slane %v1290, 1
      %v1307 = vrot.slane %v1291, 1
      %v1308 = vrot.slane %v1292, 1
      %v1309 = vrot.slane %v1293, 1
      %v1310 = vrot.slane %v1294, 1
      %v1311 = vrot.slane %v1295, 1
      %v1312 = vrot.slane %v1296, 1
      %v1321 = vadd.f32 %v1281, %v1305
      %v1322 = vadd.f32 %v1282, %v1306
      %v1323 = vadd.f32 %v1283, %v1307
      %v1324 = vadd.f32 %v1284, %v1308
      %v1325 = vadd.f32 %v1285, %v1309
      %v1326 = vadd.f32 %v1286, %v1310
      %v1327 = vadd.f32 %v1287, %v1311
      %v1328 = vadd.f32 %v1288, %v1312
      %v1337 = vrot.slane %v1321, 6
      %v1338 = vrot.slane %v1322, 5
      %v1339 = vsel %vm373, %v1338, %v1337
      %v1340 = vrot.slane %v1323, 4
      %v1341 = vsel %vm376, %v1340, %v1339
      %v1342 = vrot.slane %v1324, 3
      %v1343 = vsel %vm379, %v1342, %v1341
      %v1344 = vrot.slane %v1325, 2
      %v1345 = vsel %vm382, %v1344, %v1343
      %v1346 = vrot.slane %v1326, 1
      %v1347 = vsel %vm385, %v1346, %v1345
      %v1348 = vsel %vm388, %v1327, %v1347
      %v1349 = vrot.slane %v1328, 7
      %v1350 = vsel %vm391, %v1349, %v1348
      %1351 = vrot.lane.b32.xlu0 %v1350, 32
      %v1352 = vpop.permute.xlu0 %1351
      %1354 = vst.msk [vmem:[#allocation2 + $0x18] sm:$0xff] %vm469, %v1352
      %v1355 = vmul.f32 %v325, 0.22580644
      %v1356 = vmul.f32 %v330, 0.22580644
      %v1357 = vmul.f32 %v335, 0.22580644
      %v1358 = vmul.f32 %v340, 0.22580644
      %v1359 = vmul.f32 %v345, 0.22580644
      %v1360 = vmul.f32 %v350, 0.22580644
      %v1361 = vmul.f32 %v355, 0.22580644
      %v1362 = vmul.f32 %v360, 0.22580644
      %v1363 = vmul.f32 %v325, 0.7741935
      %v1364 = vmul.f32 %v330, 0.7741935
      %v1365 = vmul.f32 %v335, 0.7741935
      %v1366 = vmul.f32 %v340, 0.7741935
      %v1367 = vmul.f32 %v345, 0.7741935
      %v1368 = vmul.f32 %v350, 0.7741935
      %v1369 = vmul.f32 %v355, 0.7741935
      %v1370 = vmul.f32 %v360, 0.7741935
      %v1379 = vrot.slane %v1363, 1
      %v1380 = vrot.slane %v1364, 1
      %v1381 = vrot.slane %v1365, 1
      %v1382 = vrot.slane %v1366, 1
      %v1383 = vrot.slane %v1367, 1
      %v1384 = vrot.slane %v1368, 1
      %v1385 = vrot.slane %v1369, 1
      %v1386 = vrot.slane %v1370, 1
      %v1395 = vadd.f32 %v1355, %v1379
      %v1396 = vadd.f32 %v1356, %v1380
      %v1397 = vadd.f32 %v1357, %v1381
      %v1398 = vadd.f32 %v1358, %v1382
      %v1399 = vadd.f32 %v1359, %v1383
      %v1400 = vadd.f32 %v1360, %v1384
      %v1401 = vadd.f32 %v1361, %v1385
      %v1402 = vadd.f32 %v1362, %v1386
      %v1411 = vrot.slane %v1395, 6
      %v1412 = vrot.slane %v1396, 5
      %v1413 = vsel %vm373, %v1412, %v1411
      %v1414 = vrot.slane %v1397, 4
      %v1415 = vsel %vm376, %v1414, %v1413
      %v1416 = vrot.slane %v1398, 3
      %v1417 = vsel %vm379, %v1416, %v1415
      %v1418 = vrot.slane %v1399, 2
      %v1419 = vsel %vm382, %v1418, %v1417
      %v1420 = vrot.slane %v1400, 1
      %v1421 = vsel %vm385, %v1420, %v1419
      %v1422 = vsel %vm388, %v1401, %v1421
      %v1423 = vrot.slane %v1402, 7
      %v1424 = vsel %vm391, %v1423, %v1422
      %1425 = vrot.lane.b32.xlu0 %v1424, 64
      %v1426 = vpop.permute.xlu0 %1425
      %1428 = vst.msk [vmem:[#allocation2 + $0x18] sm:$0xff] %vm544, %v1426
      %v1429 = vmul.f32 %v325, 0.7419355
      %v1430 = vmul.f32 %v330, 0.7419355
      %v1431 = vmul.f32 %v335, 0.7419355
      %v1432 = vmul.f32 %v340, 0.7419355
      %v1433 = vmul.f32 %v345, 0.7419355
      %v1434 = vmul.f32 %v350, 0.7419355
      %v1435 = vmul.f32 %v355, 0.7419355
      %v1436 = vmul.f32 %v360, 0.7419355
      %v1437 = vmul.f32 %v327, 0.2580645
      %v1438 = vmul.f32 %v332, 0.2580645
      %v1439 = vmul.f32 %v337, 0.2580645
      %v1440 = vmul.f32 %v342, 0.2580645
      %v1441 = vmul.f32 %v347, 0.2580645
      %v1442 = vmul.f32 %v352, 0.2580645
      %v1443 = vmul.f32 %v357, 0.2580645
      %v1444 = vmul.f32 %v362, 0.2580645
      %v1453 = vrot.slane %v1437, 1
      %v1454 = vrot.slane %v1438, 1
      %v1455 = vrot.slane %v1439, 1
      %v1456 = vrot.slane %v1440, 1
      %v1457 = vrot.slane %v1441, 1
      %v1458 = vrot.slane %v1442, 1
      %v1459 = vrot.slane %v1443, 1
      %v1460 = vrot.slane %v1444, 1
      %v1469 = vadd.f32 %v1429, %v1453
      %v1470 = vadd.f32 %v1430, %v1454
      %v1471 = vadd.f32 %v1431, %v1455
      %v1472 = vadd.f32 %v1432, %v1456
      %v1473 = vadd.f32 %v1433, %v1457
      %v1474 = vadd.f32 %v1434, %v1458
      %v1475 = vadd.f32 %v1435, %v1459
      %v1476 = vadd.f32 %v1436, %v1460
      %v1485 = vrot.slane %v1469, 7
      %v1486 = vrot.slane %v1470, 6
      %v1487 = vsel %vm373, %v1486, %v1485
      %v1488 = vrot.slane %v1471, 5
      %v1489 = vsel %vm376, %v1488, %v1487
      %v1490 = vrot.slane %v1472, 4
      %v1491 = vsel %vm379, %v1490, %v1489
      %v1492 = vrot.slane %v1473, 3
      %v1493 = vsel %vm382, %v1492, %v1491
      %v1494 = vrot.slane %v1474, 2
      %v1495 = vsel %vm385, %v1494, %v1493
      %v1496 = vrot.slane %v1475, 1
      %v1497 = vsel %vm388, %v1496, %v1495
      %v1498 = vsel %vm391, %v1476, %v1497
      %1499 = vrot.lane.b32.xlu0 %v1498, 96
      %v1500 = vpop.permute.xlu0 %1499
      %1502 = vst.msk [vmem:[#allocation2 + $0x18] sm:$0xff] %vm619, %v1500
      %v1503 = vmul.f32 %v325, 0.2580645
      %v1504 = vmul.f32 %v330, 0.2580645
      %v1505 = vmul.f32 %v335, 0.2580645
      %v1506 = vmul.f32 %v340, 0.2580645
      %v1507 = vmul.f32 %v345, 0.2580645
      %v1508 = vmul.f32 %v350, 0.2580645
      %v1509 = vmul.f32 %v355, 0.2580645
      %v1510 = vmul.f32 %v360, 0.2580645
      %v1511 = vmul.f32 %v327, 0.7419355
      %v1512 = vmul.f32 %v332, 0.7419355
      %v1513 = vmul.f32 %v337, 0.7419355
      %v1514 = vmul.f32 %v342, 0.7419355
      %v1515 = vmul.f32 %v347, 0.7419355
      %v1516 = vmul.f32 %v352, 0.7419355
      %v1517 = vmul.f32 %v357, 0.7419355
      %v1518 = vmul.f32 %v362, 0.7419355
      %v1527 = vrot.slane %v1511, 1
      %v1528 = vrot.slane %v1512, 1
      %v1529 = vrot.slane %v1513, 1
      %v1530 = vrot.slane %v1514, 1
      %v1531 = vrot.slane %v1515, 1
      %v1532 = vrot.slane %v1516, 1
      %v1533 = vrot.slane %v1517, 1
      %v1534 = vrot.slane %v1518, 1
      %v1543 = vadd.f32 %v1503, %v1527
      %v1544 = vadd.f32 %v1504, %v1528
      %v1545 = vadd.f32 %v1505, %v1529
      %v1546 = vadd.f32 %v1506, %v1530
      %v1547 = vadd.f32 %v1507, %v1531
      %v1548 = vadd.f32 %v1508, %v1532
      %v1549 = vadd.f32 %v1509, %v1533
      %v1550 = vadd.f32 %v1510, %v1534
      %v1559 = vrot.slane %v1543, 7
      %v1560 = vrot.slane %v1544, 6
      %v1561 = vsel %vm373, %v1560, %v1559
      %v1562 = vrot.slane %v1545, 5
      %v1563 = vsel %vm376, %v1562, %v1561
      %v1564 = vrot.slane %v1546, 4
      %v1565 = vsel %vm379, %v1564, %v1563
      %v1566 = vrot.slane %v1547, 3
      %v1567 = vsel %vm382, %v1566, %v1565
      %v1568 = vrot.slane %v1548, 2
      %v1569 = vsel %vm385, %v1568, %v1567
      %v1570 = vrot.slane %v1549, 1
      %v1571 = vsel %vm388, %v1570, %v1569
      %v1572 = vsel %vm391, %v1550, %v1571
      %1574 = vst.msk [vmem:[#allocation2 + $0x20] sm:$0xff] %vm394, %v1572
      %v1575 = vmul.f32 %v327, 0.7741935
      %v1576 = vmul.f32 %v332, 0.7741935
      %v1577 = vmul.f32 %v337, 0.7741935
      %v1578 = vmul.f32 %v342, 0.7741935
      %v1579 = vmul.f32 %v347, 0.7741935
      %v1580 = vmul.f32 %v352, 0.7741935
      %v1581 = vmul.f32 %v357, 0.7741935
      %v1582 = vmul.f32 %v362, 0.7741935
      %v1583 = vmul.f32 %v327, 0.22580644
      %v1584 = vmul.f32 %v332, 0.22580644
      %v1585 = vmul.f32 %v337, 0.22580644
      %v1586 = vmul.f32 %v342, 0.22580644
      %v1587 = vmul.f32 %v347, 0.22580644
      %v1588 = vmul.f32 %v352, 0.22580644
      %v1589 = vmul.f32 %v357, 0.22580644
      %v1590 = vmul.f32 %v362, 0.22580644
      %v1599 = vrot.slane %v1583, 1
      %v1600 = vrot.slane %v1584, 1
      %v1601 = vrot.slane %v1585, 1
      %v1602 = vrot.slane %v1586, 1
      %v1603 = vrot.slane %v1587, 1
      %v1604 = vrot.slane %v1588, 1
      %v1605 = vrot.slane %v1589, 1
      %v1606 = vrot.slane %v1590, 1
      %v1615 = vadd.f32 %v1575, %v1599
      %v1616 = vadd.f32 %v1576, %v1600
      %v1617 = vadd.f32 %v1577, %v1601
      %v1618 = vadd.f32 %v1578, %v1602
      %v1619 = vadd.f32 %v1579, %v1603
      %v1620 = vadd.f32 %v1580, %v1604
      %v1621 = vadd.f32 %v1581, %v1605
      %v1622 = vadd.f32 %v1582, %v1606
      %v1631 = vrot.slane %v1616, 7
      %v1632 = vsel %vm373, %v1631, %v1615
      %v1633 = vrot.slane %v1617, 6
      %v1634 = vsel %vm376, %v1633, %v1632
      %v1635 = vrot.slane %v1618, 5
      %v1636 = vsel %vm379, %v1635, %v1634
      %v1637 = vrot.slane %v1619, 4
      %v1638 = vsel %vm382, %v1637, %v1636
      %v1639 = vrot.slane %v1620, 3
      %v1640 = vsel %vm385, %v1639, %v1638
      %v1641 = vrot.slane %v1621, 2
      %v1642 = vsel %vm388, %v1641, %v1640
      %v1643 = vrot.slane %v1622, 1
      %v1644 = vsel %vm391, %v1643, %v1642
      %1645 = vrot.lane.b32.xlu0 %v1644, 32
      %v1646 = vpop.permute.xlu0 %1645
      %1648 = vst.msk [vmem:[#allocation2 + $0x20] sm:$0xff] %vm469, %v1646
      %v1649 = vmul.f32 %v327, 0.29032257
      %v1650 = vmul.f32 %v332, 0.29032257
      %v1651 = vmul.f32 %v337, 0.29032257
      %v1652 = vmul.f32 %v342, 0.29032257
      %v1653 = vmul.f32 %v347, 0.29032257
      %v1654 = vmul.f32 %v352, 0.29032257
      %v1655 = vmul.f32 %v357, 0.29032257
      %v1656 = vmul.f32 %v362, 0.29032257
      %v1657 = vmul.f32 %v327, 0.7096774
      %v1658 = vmul.f32 %v332, 0.7096774
      %v1659 = vmul.f32 %v337, 0.7096774
      %v1660 = vmul.f32 %v342, 0.7096774
      %v1661 = vmul.f32 %v347, 0.7096774
      %v1662 = vmul.f32 %v352, 0.7096774
      %v1663 = vmul.f32 %v357, 0.7096774
      %v1664 = vmul.f32 %v362, 0.7096774
      %v1673 = vrot.slane %v1657, 1
      %v1674 = vrot.slane %v1658, 1
      %v1675 = vrot.slane %v1659, 1
      %v1676 = vrot.slane %v1660, 1
      %v1677 = vrot.slane %v1661, 1
      %v1678 = vrot.slane %v1662, 1
      %v1679 = vrot.slane %v1663, 1
      %v1680 = vrot.slane %v1664, 1
      %v1689 = vadd.f32 %v1649, %v1673
      %v1690 = vadd.f32 %v1650, %v1674
      %v1691 = vadd.f32 %v1651, %v1675
      %v1692 = vadd.f32 %v1652, %v1676
      %v1693 = vadd.f32 %v1653, %v1677
      %v1694 = vadd.f32 %v1654, %v1678
      %v1695 = vadd.f32 %v1655, %v1679
      %v1696 = vadd.f32 %v1656, %v1680
      %v1705 = vrot.slane %v1690, 7
      %v1706 = vsel %vm373, %v1705, %v1689
      %v1707 = vrot.slane %v1691, 6
      %v1708 = vsel %vm376, %v1707, %v1706
      %v1709 = vrot.slane %v1692, 5
      %v1710 = vsel %vm379, %v1709, %v1708
      %v1711 = vrot.slane %v1693, 4
      %v1712 = vsel %vm382, %v1711, %v1710
      %v1713 = vrot.slane %v1694, 3
      %v1714 = vsel %vm385, %v1713, %v1712
      %v1715 = vrot.slane %v1695, 2
      %v1716 = vsel %vm388, %v1715, %v1714
      %v1717 = vrot.slane %v1696, 1
      %v1718 = vsel %vm391, %v1717, %v1716
      %1719 = vrot.lane.b32.xlu0 %v1718, 64
      %v1720 = vpop.permute.xlu0 %1719
      %1722 = vst.msk [vmem:[#allocation2 + $0x20] sm:$0xff] %vm544, %v1720
      %v1723 = vmul.f32 %v327, 0.8064516
      %v1724 = vmul.f32 %v332, 0.8064516
      %v1725 = vmul.f32 %v337, 0.8064516
      %v1726 = vmul.f32 %v342, 0.8064516
      %v1727 = vmul.f32 %v347, 0.8064516
      %v1728 = vmul.f32 %v352, 0.8064516
      %v1729 = vmul.f32 %v357, 0.8064516
      %v1730 = vmul.f32 %v362, 0.8064516
      %v1731 = vmul.f32 %v327, 0.19354838
      %v1732 = vmul.f32 %v332, 0.19354838
      %v1733 = vmul.f32 %v337, 0.19354838
      %v1734 = vmul.f32 %v342, 0.19354838
      %v1735 = vmul.f32 %v347, 0.19354838
      %v1736 = vmul.f32 %v352, 0.19354838
      %v1737 = vmul.f32 %v357, 0.19354838
      %v1738 = vmul.f32 %v362, 0.19354838
      %v1747 = vrot.slane %v1731, 1
      %v1748 = vrot.slane %v1732, 1
      %v1749 = vrot.slane %v1733, 1
      %v1750 = vrot.slane %v1734, 1
      %v1751 = vrot.slane %v1735, 1
      %v1752 = vrot.slane %v1736, 1
      %v1753 = vrot.slane %v1737, 1
      %v1754 = vrot.slane %v1738, 1
      %v1763 = vadd.f32 %v1723, %v1747
      %v1764 = vadd.f32 %v1724, %v1748
      %v1765 = vadd.f32 %v1725, %v1749
      %v1766 = vadd.f32 %v1726, %v1750
      %v1767 = vadd.f32 %v1727, %v1751
      %v1768 = vadd.f32 %v1728, %v1752
      %v1769 = vadd.f32 %v1729, %v1753
      %v1770 = vadd.f32 %v1730, %v1754
      %v1779 = vrot.slane %v1763, 1
      %v1780 = vsel %vm373, %v1764, %v1779
      %v1781 = vrot.slane %v1765, 7
      %v1782 = vsel %vm376, %v1781, %v1780
      %v1783 = vrot.slane %v1766, 6
      %v1784 = vsel %vm379, %v1783, %v1782
      %v1785 = vrot.slane %v1767, 5
      %v1786 = vsel %vm382, %v1785, %v1784
      %v1787 = vrot.slane %v1768, 4
      %v1788 = vsel %vm385, %v1787, %v1786
      %v1789 = vrot.slane %v1769, 3
      %v1790 = vsel %vm388, %v1789, %v1788
      %v1791 = vrot.slane %v1770, 2
      %v1792 = vsel %vm391, %v1791, %v1790
      %1793 = vrot.lane.b32.xlu0 %v1792, 96
      %v1794 = vpop.permute.xlu0 %1793
      %1796 = vst.msk [vmem:[#allocation2 + $0x20] sm:$0xff] %vm619, %v1794
      %v1797 = vmul.f32 %v327, 0.32258064
      %v1798 = vmul.f32 %v332, 0.32258064
      %v1799 = vmul.f32 %v337, 0.32258064
      %v1800 = vmul.f32 %v342, 0.32258064
      %v1801 = vmul.f32 %v347, 0.32258064
      %v1802 = vmul.f32 %v352, 0.32258064
      %v1803 = vmul.f32 %v357, 0.32258064
      %v1804 = vmul.f32 %v362, 0.32258064
      %v1805 = vmul.f32 %v327, 0.67741936
      %v1806 = vmul.f32 %v332, 0.67741936
      %v1807 = vmul.f32 %v337, 0.67741936
      %v1808 = vmul.f32 %v342, 0.67741936
      %v1809 = vmul.f32 %v347, 0.67741936
      %v1810 = vmul.f32 %v352, 0.67741936
      %v1811 = vmul.f32 %v357, 0.67741936
      %v1812 = vmul.f32 %v362, 0.67741936
      %v1821 = vrot.slane %v1805, 1
      %v1822 = vrot.slane %v1806, 1
      %v1823 = vrot.slane %v1807, 1
      %v1824 = vrot.slane %v1808, 1
      %v1825 = vrot.slane %v1809, 1
      %v1826 = vrot.slane %v1810, 1
      %v1827 = vrot.slane %v1811, 1
      %v1828 = vrot.slane %v1812, 1
      %v1837 = vadd.f32 %v1797, %v1821
      %v1838 = vadd.f32 %v1798, %v1822
      %v1839 = vadd.f32 %v1799, %v1823
      %v1840 = vadd.f32 %v1800, %v1824
      %v1841 = vadd.f32 %v1801, %v1825
      %v1842 = vadd.f32 %v1802, %v1826
      %v1843 = vadd.f32 %v1803, %v1827
      %v1844 = vadd.f32 %v1804, %v1828
      %v1853 = vrot.slane %v1837, 1
      %v1854 = vsel %vm373, %v1838, %v1853
      %v1855 = vrot.slane %v1839, 7
      %v1856 = vsel %vm376, %v1855, %v1854
      %v1857 = vrot.slane %v1840, 6
      %v1858 = vsel %vm379, %v1857, %v1856
      %v1859 = vrot.slane %v1841, 5
      %v1860 = vsel %vm382, %v1859, %v1858
      %v1861 = vrot.slane %v1842, 4
      %v1862 = vsel %vm385, %v1861, %v1860
      %v1863 = vrot.slane %v1843, 3
      %v1864 = vsel %vm388, %v1863, %v1862
      %v1865 = vrot.slane %v1844, 2
      %v1866 = vsel %vm391, %v1865, %v1864
      %1868 = vst.msk [vmem:[#allocation2 + $0x28] sm:$0xff] %vm394, %v1866
      %v1869 = vmul.f32 %v327, 0.83870965
      %v1870 = vmul.f32 %v332, 0.83870965
      %v1871 = vmul.f32 %v337, 0.83870965
      %v1872 = vmul.f32 %v342, 0.83870965
      %v1873 = vmul.f32 %v347, 0.83870965
      %v1874 = vmul.f32 %v352, 0.83870965
      %v1875 = vmul.f32 %v357, 0.83870965
      %v1876 = vmul.f32 %v362, 0.83870965
      %v1877 = vmul.f32 %v327, 0.16129032
      %v1878 = vmul.f32 %v332, 0.16129032
      %v1879 = vmul.f32 %v337, 0.16129032
      %v1880 = vmul.f32 %v342, 0.16129032
      %v1881 = vmul.f32 %v347, 0.16129032
      %v1882 = vmul.f32 %v352, 0.16129032
      %v1883 = vmul.f32 %v357, 0.16129032
      %v1884 = vmul.f32 %v362, 0.16129032
      %v1893 = vrot.slane %v1877, 1
      %v1894 = vrot.slane %v1878, 1
      %v1895 = vrot.slane %v1879, 1
      %v1896 = vrot.slane %v1880, 1
      %v1897 = vrot.slane %v1881, 1
      %v1898 = vrot.slane %v1882, 1
      %v1899 = vrot.slane %v1883, 1
      %v1900 = vrot.slane %v1884, 1
      %v1909 = vadd.f32 %v1869, %v1893
      %v1910 = vadd.f32 %v1870, %v1894
      %v1911 = vadd.f32 %v1871, %v1895
      %v1912 = vadd.f32 %v1872, %v1896
      %v1913 = vadd.f32 %v1873, %v1897
      %v1914 = vadd.f32 %v1874, %v1898
      %v1915 = vadd.f32 %v1875, %v1899
      %v1916 = vadd.f32 %v1876, %v1900
      %v1925 = vrot.slane %v1909, 2
      %v1926 = vrot.slane %v1910, 1
      %v1927 = vsel %vm373, %v1926, %v1925
      %v1928 = vsel %vm376, %v1911, %v1927
      %v1929 = vrot.slane %v1912, 7
      %v1930 = vsel %vm379, %v1929, %v1928
      %v1931 = vrot.slane %v1913, 6
      %v1932 = vsel %vm382, %v1931, %v1930
      %v1933 = vrot.slane %v1914, 5
      %v1934 = vsel %vm385, %v1933, %v1932
      %v1935 = vrot.slane %v1915, 4
      %v1936 = vsel %vm388, %v1935, %v1934
      %v1937 = vrot.slane %v1916, 3
      %v1938 = vsel %vm391, %v1937, %v1936
      %1939 = vrot.lane.b32.xlu0 %v1938, 32
      %v1940 = vpop.permute.xlu0 %1939
      %1942 = vst.msk [vmem:[#allocation2 + $0x28] sm:$0xff] %vm469, %v1940
      %v1943 = vmul.f32 %v327, 0.3548387
      %v1944 = vmul.f32 %v332, 0.3548387
      %v1945 = vmul.f32 %v337, 0.3548387
      %v1946 = vmul.f32 %v342, 0.3548387
      %v1947 = vmul.f32 %v347, 0.3548387
      %v1948 = vmul.f32 %v352, 0.3548387
      %v1949 = vmul.f32 %v357, 0.3548387
      %v1950 = vmul.f32 %v362, 0.3548387
      %v1951 = vmul.f32 %v327, 0.6451613
      %v1952 = vmul.f32 %v332, 0.6451613
      %v1953 = vmul.f32 %v337, 0.6451613
      %v1954 = vmul.f32 %v342, 0.6451613
      %v1955 = vmul.f32 %v347, 0.6451613
      %v1956 = vmul.f32 %v352, 0.6451613
      %v1957 = vmul.f32 %v357, 0.6451613
      %v1958 = vmul.f32 %v362, 0.6451613
      %v1967 = vrot.slane %v1951, 1
      %v1968 = vrot.slane %v1952, 1
      %v1969 = vrot.slane %v1953, 1
      %v1970 = vrot.slane %v1954, 1
      %v1971 = vrot.slane %v1955, 1
      %v1972 = vrot.slane %v1956, 1
      %v1973 = vrot.slane %v1957, 1
      %v1974 = vrot.slane %v1958, 1
      %v1983 = vadd.f32 %v1943, %v1967
      %v1984 = vadd.f32 %v1944, %v1968
      %v1985 = vadd.f32 %v1945, %v1969
      %v1986 = vadd.f32 %v1946, %v1970
      %v1987 = vadd.f32 %v1947, %v1971
      %v1988 = vadd.f32 %v1948, %v1972
      %v1989 = vadd.f32 %v1949, %v1973
      %v1990 = vadd.f32 %v1950, %v1974
      %v1999 = vrot.slane %v1983, 2
      %v2000 = vrot.slane %v1984, 1
      %v2001 = vsel %vm373, %v2000, %v1999
      %v2002 = vsel %vm376, %v1985, %v2001
      %v2003 = vrot.slane %v1986, 7
      %v2004 = vsel %vm379, %v2003, %v2002
      %v2005 = vrot.slane %v1987, 6
      %v2006 = vsel %vm382, %v2005, %v2004
      %v2007 = vrot.slane %v1988, 5
      %v2008 = vsel %vm385, %v2007, %v2006
      %v2009 = vrot.slane %v1989, 4
      %v2010 = vsel %vm388, %v2009, %v2008
      %v2011 = vrot.slane %v1990, 3
      %v2012 = vsel %vm391, %v2011, %v2010
      %2013 = vrot.lane.b32.xlu0 %v2012, 64
      %v2014 = vpop.permute.xlu0 %2013
      %2016 = vst.msk [vmem:[#allocation2 + $0x28] sm:$0xff] %vm544, %v2014
      %v2017 = vmul.f32 %v327, 0.87096775
      %v2018 = vmul.f32 %v332, 0.87096775
      %v2019 = vmul.f32 %v337, 0.87096775
      %v2020 = vmul.f32 %v342, 0.87096775
      %v2021 = vmul.f32 %v347, 0.87096775
      %v2022 = vmul.f32 %v352, 0.87096775
      %v2023 = vmul.f32 %v357, 0.87096775
      %v2024 = vmul.f32 %v362, 0.87096775
      %v2025 = vmul.f32 %v327, 0.12903225
      %v2026 = vmul.f32 %v332, 0.12903225
      %v2027 = vmul.f32 %v337, 0.12903225
      %v2028 = vmul.f32 %v342, 0.12903225
      %v2029 = vmul.f32 %v347, 0.12903225
      %v2030 = vmul.f32 %v352, 0.12903225
      %v2031 = vmul.f32 %v357, 0.12903225
      %v2032 = vmul.f32 %v362, 0.12903225
      %v2041 = vrot.slane %v2025, 1
      %v2042 = vrot.slane %v2026, 1
      %v2043 = vrot.slane %v2027, 1
      %v2044 = vrot.slane %v2028, 1
      %v2045 = vrot.slane %v2029, 1
      %v2046 = vrot.slane %v2030, 1
      %v2047 = vrot.slane %v2031, 1
      %v2048 = vrot.slane %v2032, 1
      %v2057 = vadd.f32 %v2017, %v2041
      %v2058 = vadd.f32 %v2018, %v2042
      %v2059 = vadd.f32 %v2019, %v2043
      %v2060 = vadd.f32 %v2020, %v2044
      %v2061 = vadd.f32 %v2021, %v2045
      %v2062 = vadd.f32 %v2022, %v2046
      %v2063 = vadd.f32 %v2023, %v2047
      %v2064 = vadd.f32 %v2024, %v2048
      %v2073 = vrot.slane %v2057, 3
      %v2074 = vrot.slane %v2058, 2
      %v2075 = vsel %vm373, %v2074, %v2073
      %v2076 = vrot.slane %v2059, 1
      %v2077 = vsel %vm376, %v2076, %v2075
      %v2078 = vsel %vm379, %v2060, %v2077
      %v2079 = vrot.slane %v2061, 7
      %v2080 = vsel %vm382, %v2079, %v2078
      %v2081 = vrot.slane %v2062, 6
      %v2082 = vsel %vm385, %v2081, %v2080
      %v2083 = vrot.slane %v2063, 5
      %v2084 = vsel %vm388, %v2083, %v2082
      %v2085 = vrot.slane %v2064, 4
      %v2086 = vsel %vm391, %v2085, %v2084
      %2087 = vrot.lane.b32.xlu0 %v2086, 96
      %v2088 = vpop.permute.xlu0 %2087
      %2090 = vst.msk [vmem:[#allocation2 + $0x28] sm:$0xff] %vm619, %v2088
      %v2091 = vmul.f32 %v327, 0.38709676
      %v2092 = vmul.f32 %v332, 0.38709676
      %v2093 = vmul.f32 %v337, 0.38709676
      %v2094 = vmul.f32 %v342, 0.38709676
      %v2095 = vmul.f32 %v347, 0.38709676
      %v2096 = vmul.f32 %v352, 0.38709676
      %v2097 = vmul.f32 %v357, 0.38709676
      %v2098 = vmul.f32 %v362, 0.38709676
      %v2099 = vmul.f32 %v327, 0.61290324
      %v2100 = vmul.f32 %v332, 0.61290324
      %v2101 = vmul.f32 %v337, 0.61290324
      %v2102 = vmul.f32 %v342, 0.61290324
      %v2103 = vmul.f32 %v347, 0.61290324
      %v2104 = vmul.f32 %v352, 0.61290324
      %v2105 = vmul.f32 %v357, 0.61290324
      %v2106 = vmul.f32 %v362, 0.61290324
      %v2115 = vrot.slane %v2099, 1
      %v2116 = vrot.slane %v2100, 1
      %v2117 = vrot.slane %v2101, 1
      %v2118 = vrot.slane %v2102, 1
      %v2119 = vrot.slane %v2103, 1
      %v2120 = vrot.slane %v2104, 1
      %v2121 = vrot.slane %v2105, 1
      %v2122 = vrot.slane %v2106, 1
      %v2131 = vadd.f32 %v2091, %v2115
      %v2132 = vadd.f32 %v2092, %v2116
      %v2133 = vadd.f32 %v2093, %v2117
      %v2134 = vadd.f32 %v2094, %v2118
      %v2135 = vadd.f32 %v2095, %v2119
      %v2136 = vadd.f32 %v2096, %v2120
      %v2137 = vadd.f32 %v2097, %v2121
      %v2138 = vadd.f32 %v2098, %v2122
      %v2147 = vrot.slane %v2131, 3
      %v2148 = vrot.slane %v2132, 2
      %v2149 = vsel %vm373, %v2148, %v2147
      %v2150 = vrot.slane %v2133, 1
      %v2151 = vsel %vm376, %v2150, %v2149
      %v2152 = vsel %vm379, %v2134, %v2151
      %v2153 = vrot.slane %v2135, 7
      %v2154 = vsel %vm382, %v2153, %v2152
      %v2155 = vrot.slane %v2136, 6
      %v2156 = vsel %vm385, %v2155, %v2154
      %v2157 = vrot.slane %v2137, 5
      %v2158 = vsel %vm388, %v2157, %v2156
      %v2159 = vrot.slane %v2138, 4
      %v2160 = vsel %vm391, %v2159, %v2158
      %2162 = vst.msk [vmem:[#allocation2 + $0x30] sm:$0xff] %vm394, %v2160
      %v2163 = vmul.f32 %v327, 0.9032258
      %v2164 = vmul.f32 %v332, 0.9032258
      %v2165 = vmul.f32 %v337, 0.9032258
      %v2166 = vmul.f32 %v342, 0.9032258
      %v2167 = vmul.f32 %v347, 0.9032258
      %v2168 = vmul.f32 %v352, 0.9032258
      %v2169 = vmul.f32 %v357, 0.9032258
      %v2170 = vmul.f32 %v362, 0.9032258
      %v2171 = vmul.f32 %v327, 0.09677419
      %v2172 = vmul.f32 %v332, 0.09677419
      %v2173 = vmul.f32 %v337, 0.09677419
      %v2174 = vmul.f32 %v342, 0.09677419
      %v2175 = vmul.f32 %v347, 0.09677419
      %v2176 = vmul.f32 %v352, 0.09677419
      %v2177 = vmul.f32 %v357, 0.09677419
      %v2178 = vmul.f32 %v362, 0.09677419
      %v2187 = vrot.slane %v2171, 1
      %v2188 = vrot.slane %v2172, 1
      %v2189 = vrot.slane %v2173, 1
      %v2190 = vrot.slane %v2174, 1
      %v2191 = vrot.slane %v2175, 1
      %v2192 = vrot.slane %v2176, 1
      %v2193 = vrot.slane %v2177, 1
      %v2194 = vrot.slane %v2178, 1
      %v2203 = vadd.f32 %v2163, %v2187
      %v2204 = vadd.f32 %v2164, %v2188
      %v2205 = vadd.f32 %v2165, %v2189
      %v2206 = vadd.f32 %v2166, %v2190
      %v2207 = vadd.f32 %v2167, %v2191
      %v2208 = vadd.f32 %v2168, %v2192
      %v2209 = vadd.f32 %v2169, %v2193
      %v2210 = vadd.f32 %v2170, %v2194
      %v2219 = vrot.slane %v2203, 4
      %v2220 = vrot.slane %v2204, 3
      %v2221 = vsel %vm373, %v2220, %v2219
      %v2222 = vrot.slane %v2205, 2
      %v2223 = vsel %vm376, %v2222, %v2221
      %v2224 = vrot.slane %v2206, 1
      %v2225 = vsel %vm379, %v2224, %v2223
      %v2226 = vsel %vm382, %v2207, %v2225
      %v2227 = vrot.slane %v2208, 7
      %v2228 = vsel %vm385, %v2227, %v2226
      %v2229 = vrot.slane %v2209, 6
      %v2230 = vsel %vm388, %v2229, %v2228
      %v2231 = vrot.slane %v2210, 5
      %v2232 = vsel %vm391, %v2231, %v2230
      %2233 = vrot.lane.b32.xlu0 %v2232, 32
      %v2234 = vpop.permute.xlu0 %2233
      %2236 = vst.msk [vmem:[#allocation2 + $0x30] sm:$0xff] %vm469, %v2234
      %v2237 = vmul.f32 %v327, 0.41935483
      %v2238 = vmul.f32 %v332, 0.41935483
      %v2239 = vmul.f32 %v337, 0.41935483
      %v2240 = vmul.f32 %v342, 0.41935483
      %v2241 = vmul.f32 %v347, 0.41935483
      %v2242 = vmul.f32 %v352, 0.41935483
      %v2243 = vmul.f32 %v357, 0.41935483
      %v2244 = vmul.f32 %v362, 0.41935483
      %v2245 = vmul.f32 %v327, 0.58064514
      %v2246 = vmul.f32 %v332, 0.58064514
      %v2247 = vmul.f32 %v337, 0.58064514
      %v2248 = vmul.f32 %v342, 0.58064514
      %v2249 = vmul.f32 %v347, 0.58064514
      %v2250 = vmul.f32 %v352, 0.58064514
      %v2251 = vmul.f32 %v357, 0.58064514
      %v2252 = vmul.f32 %v362, 0.58064514
      %v2261 = vrot.slane %v2245, 1
      %v2262 = vrot.slane %v2246, 1
      %v2263 = vrot.slane %v2247, 1
      %v2264 = vrot.slane %v2248, 1
      %v2265 = vrot.slane %v2249, 1
      %v2266 = vrot.slane %v2250, 1
      %v2267 = vrot.slane %v2251, 1
      %v2268 = vrot.slane %v2252, 1
      %v2277 = vadd.f32 %v2237, %v2261
      %v2278 = vadd.f32 %v2238, %v2262
      %v2279 = vadd.f32 %v2239, %v2263
      %v2280 = vadd.f32 %v2240, %v2264
      %v2281 = vadd.f32 %v2241, %v2265
      %v2282 = vadd.f32 %v2242, %v2266
      %v2283 = vadd.f32 %v2243, %v2267
      %v2284 = vadd.f32 %v2244, %v2268
      %v2293 = vrot.slane %v2277, 4
      %v2294 = vrot.slane %v2278, 3
      %v2295 = vsel %vm373, %v2294, %v2293
      %v2296 = vrot.slane %v2279, 2
      %v2297 = vsel %vm376, %v2296, %v2295
      %v2298 = vrot.slane %v2280, 1
      %v2299 = vsel %vm379, %v2298, %v2297
      %v2300 = vsel %vm382, %v2281, %v2299
      %v2301 = vrot.slane %v2282, 7
      %v2302 = vsel %vm385, %v2301, %v2300
      %v2303 = vrot.slane %v2283, 6
      %v2304 = vsel %vm388, %v2303, %v2302
      %v2305 = vrot.slane %v2284, 5
      %v2306 = vsel %vm391, %v2305, %v2304
      %2307 = vrot.lane.b32.xlu0 %v2306, 64
      %v2308 = vpop.permute.xlu0 %2307
      %2310 = vst.msk [vmem:[#allocation2 + $0x30] sm:$0xff] %vm544, %v2308
      %v2311 = vmul.f32 %v327, 0.9354839
      %v2312 = vmul.f32 %v332, 0.9354839
      %v2313 = vmul.f32 %v337, 0.9354839
      %v2314 = vmul.f32 %v342, 0.9354839
      %v2315 = vmul.f32 %v347, 0.9354839
      %v2316 = vmul.f32 %v352, 0.9354839
      %v2317 = vmul.f32 %v357, 0.9354839
      %v2318 = vmul.f32 %v362, 0.9354839
      %v2319 = vmul.f32 %v327, 0.06451613
      %v2320 = vmul.f32 %v332, 0.06451613
      %v2321 = vmul.f32 %v337, 0.06451613
      %v2322 = vmul.f32 %v342, 0.06451613
      %v2323 = vmul.f32 %v347, 0.06451613
      %v2324 = vmul.f32 %v352, 0.06451613
      %v2325 = vmul.f32 %v357, 0.06451613
      %v2326 = vmul.f32 %v362, 0.06451613
      %v2335 = vrot.slane %v2319, 1
      %v2336 = vrot.slane %v2320, 1
      %v2337 = vrot.slane %v2321, 1
      %v2338 = vrot.slane %v2322, 1
      %v2339 = vrot.slane %v2323, 1
      %v2340 = vrot.slane %v2324, 1
      %v2341 = vrot.slane %v2325, 1
      %v2342 = vrot.slane %v2326, 1
      %v2351 = vadd.f32 %v2311, %v2335
      %v2352 = vadd.f32 %v2312, %v2336
      %v2353 = vadd.f32 %v2313, %v2337
      %v2354 = vadd.f32 %v2314, %v2338
      %v2355 = vadd.f32 %v2315, %v2339
      %v2356 = vadd.f32 %v2316, %v2340
      %v2357 = vadd.f32 %v2317, %v2341
      %v2358 = vadd.f32 %v2318, %v2342
      %v2367 = vrot.slane %v2351, 5
      %v2368 = vrot.slane %v2352, 4
      %v2369 = vsel %vm373, %v2368, %v2367
      %v2370 = vrot.slane %v2353, 3
      %v2371 = vsel %vm376, %v2370, %v2369
      %v2372 = vrot.slane %v2354, 2
      %v2373 = vsel %vm379, %v2372, %v2371
      %v2374 = vrot.slane %v2355, 1
      %v2375 = vsel %vm382, %v2374, %v2373
      %v2376 = vsel %vm385, %v2356, %v2375
      %v2377 = vrot.slane %v2357, 7
      %v2378 = vsel %vm388, %v2377, %v2376
      %v2379 = vrot.slane %v2358, 6
      %v2380 = vsel %vm391, %v2379, %v2378
      %2381 = vrot.lane.b32.xlu0 %v2380, 96
      %v2382 = vpop.permute.xlu0 %2381
      %2384 = vst.msk [vmem:[#allocation2 + $0x30] sm:$0xff] %vm619, %v2382
      %v2385 = vmul.f32 %v327, 0.4516129
      %v2386 = vmul.f32 %v332, 0.4516129
      %v2387 = vmul.f32 %v337, 0.4516129
      %v2388 = vmul.f32 %v342, 0.4516129
      %v2389 = vmul.f32 %v347, 0.4516129
      %v2390 = vmul.f32 %v352, 0.4516129
      %v2391 = vmul.f32 %v357, 0.4516129
      %v2392 = vmul.f32 %v362, 0.4516129
      %v2393 = vmul.f32 %v327, 0.5483871
      %v2394 = vmul.f32 %v332, 0.5483871
      %v2395 = vmul.f32 %v337, 0.5483871
      %v2396 = vmul.f32 %v342, 0.5483871
      %v2397 = vmul.f32 %v347, 0.5483871
      %v2398 = vmul.f32 %v352, 0.5483871
      %v2399 = vmul.f32 %v357, 0.5483871
      %v2400 = vmul.f32 %v362, 0.5483871
      %v2409 = vrot.slane %v2393, 1
      %v2410 = vrot.slane %v2394, 1
      %v2411 = vrot.slane %v2395, 1
      %v2412 = vrot.slane %v2396, 1
      %v2413 = vrot.slane %v2397, 1
      %v2414 = vrot.slane %v2398, 1
      %v2415 = vrot.slane %v2399, 1
      %v2416 = vrot.slane %v2400, 1
      %v2425 = vadd.f32 %v2385, %v2409
      %v2426 = vadd.f32 %v2386, %v2410
      %v2427 = vadd.f32 %v2387, %v2411
      %v2428 = vadd.f32 %v2388, %v2412
      %v2429 = vadd.f32 %v2389, %v2413
      %v2430 = vadd.f32 %v2390, %v2414
      %v2431 = vadd.f32 %v2391, %v2415
      %v2432 = vadd.f32 %v2392, %v2416
      %v2441 = vrot.slane %v2425, 5
      %v2442 = vrot.slane %v2426, 4
      %v2443 = vsel %vm373, %v2442, %v2441
      %v2444 = vrot.slane %v2427, 3
      %v2445 = vsel %vm376, %v2444, %v2443
      %v2446 = vrot.slane %v2428, 2
      %v2447 = vsel %vm379, %v2446, %v2445
      %v2448 = vrot.slane %v2429, 1
      %v2449 = vsel %vm382, %v2448, %v2447
      %v2450 = vsel %vm385, %v2430, %v2449
      %v2451 = vrot.slane %v2431, 7
      %v2452 = vsel %vm388, %v2451, %v2450
      %v2453 = vrot.slane %v2432, 6
      %v2454 = vsel %vm391, %v2453, %v2452
      %2456 = vst.msk [vmem:[#allocation2 + $0x38] sm:$0xff] %vm394, %v2454
      %v2457 = vmul.f32 %v327, 0.9677419
      %v2458 = vmul.f32 %v332, 0.9677419
      %v2459 = vmul.f32 %v337, 0.9677419
      %v2460 = vmul.f32 %v342, 0.9677419
      %v2461 = vmul.f32 %v347, 0.9677419
      %v2462 = vmul.f32 %v352, 0.9677419
      %v2463 = vmul.f32 %v357, 0.9677419
      %v2464 = vmul.f32 %v362, 0.9677419
      %v2465 = vmul.f32 %v327, 0.032258064
      %v2466 = vmul.f32 %v332, 0.032258064
      %v2467 = vmul.f32 %v337, 0.032258064
      %v2468 = vmul.f32 %v342, 0.032258064
      %v2469 = vmul.f32 %v347, 0.032258064
      %v2470 = vmul.f32 %v352, 0.032258064
      %v2471 = vmul.f32 %v357, 0.032258064
      %v2472 = vmul.f32 %v362, 0.032258064
      %v2481 = vrot.slane %v2465, 1
      %v2482 = vrot.slane %v2466, 1
      %v2483 = vrot.slane %v2467, 1
      %v2484 = vrot.slane %v2468, 1
      %v2485 = vrot.slane %v2469, 1
      %v2486 = vrot.slane %v2470, 1
      %v2487 = vrot.slane %v2471, 1
      %v2488 = vrot.slane %v2472, 1
      %v2497 = vadd.f32 %v2457, %v2481
      %v2498 = vadd.f32 %v2458, %v2482
      %v2499 = vadd.f32 %v2459, %v2483
      %v2500 = vadd.f32 %v2460, %v2484
      %v2501 = vadd.f32 %v2461, %v2485
      %v2502 = vadd.f32 %v2462, %v2486
      %v2503 = vadd.f32 %v2463, %v2487
      %v2504 = vadd.f32 %v2464, %v2488
      %v2513 = vrot.slane %v2497, 6
      %v2514 = vrot.slane %v2498, 5
      %v2515 = vsel %vm373, %v2514, %v2513
      %v2516 = vrot.slane %v2499, 4
      %v2517 = vsel %vm376, %v2516, %v2515
      %v2518 = vrot.slane %v2500, 3
      %v2519 = vsel %vm379, %v2518, %v2517
      %v2520 = vrot.slane %v2501, 2
      %v2521 = vsel %vm382, %v2520, %v2519
      %v2522 = vrot.slane %v2502, 1
      %v2523 = vsel %vm385, %v2522, %v2521
      %v2524 = vsel %vm388, %v2503, %v2523
      %v2525 = vrot.slane %v2504, 7
      %v2526 = vsel %vm391, %v2525, %v2524
      %2527 = vrot.lane.b32.xlu0 %v2526, 32
      %v2528 = vpop.permute.xlu0 %2527
      %2530 = vst.msk [vmem:[#allocation2 + $0x38] sm:$0xff] %vm469, %v2528
      %v2531 = vmul.f32 %v327, 0.48387095
      %v2532 = vmul.f32 %v332, 0.48387095
      %v2533 = vmul.f32 %v337, 0.48387095
      %v2534 = vmul.f32 %v342, 0.48387095
      %v2535 = vmul.f32 %v347, 0.48387095
      %v2536 = vmul.f32 %v352, 0.48387095
      %v2537 = vmul.f32 %v357, 0.48387095
      %v2538 = vmul.f32 %v362, 0.48387095
      %v2539 = vmul.f32 %v327, 0.516129
      %v2540 = vmul.f32 %v332, 0.516129
      %v2541 = vmul.f32 %v337, 0.516129
      %v2542 = vmul.f32 %v342, 0.516129
      %v2543 = vmul.f32 %v347, 0.516129
      %v2544 = vmul.f32 %v352, 0.516129
      %v2545 = vmul.f32 %v357, 0.516129
      %v2546 = vmul.f32 %v362, 0.516129
      %v2555 = vrot.slane %v2539, 1
      %v2556 = vrot.slane %v2540, 1
      %v2557 = vrot.slane %v2541, 1
      %v2558 = vrot.slane %v2542, 1
      %v2559 = vrot.slane %v2543, 1
      %v2560 = vrot.slane %v2544, 1
      %v2561 = vrot.slane %v2545, 1
      %v2562 = vrot.slane %v2546, 1
      %v2571 = vadd.f32 %v2531, %v2555
      %v2572 = vadd.f32 %v2532, %v2556
      %v2573 = vadd.f32 %v2533, %v2557
      %v2574 = vadd.f32 %v2534, %v2558
      %v2575 = vadd.f32 %v2535, %v2559
      %v2576 = vadd.f32 %v2536, %v2560
      %v2577 = vadd.f32 %v2537, %v2561
      %v2578 = vadd.f32 %v2538, %v2562
      %v2587 = vrot.slane %v2571, 6
      %v2588 = vrot.slane %v2572, 5
      %v2589 = vsel %vm373, %v2588, %v2587
      %v2590 = vrot.slane %v2573, 4
      %v2591 = vsel %vm376, %v2590, %v2589
      %v2592 = vrot.slane %v2574, 3
      %v2593 = vsel %vm379, %v2592, %v2591
      %v2594 = vrot.slane %v2575, 2
      %v2595 = vsel %vm382, %v2594, %v2593
      %v2596 = vrot.slane %v2576, 1
      %v2597 = vsel %vm385, %v2596, %v2595
      %v2598 = vsel %vm388, %v2577, %v2597
      %v2599 = vrot.slane %v2578, 7
      %v2600 = vsel %vm391, %v2599, %v2598
      %2601 = vrot.lane.b32.xlu0 %v2600, 64
      %v2602 = vpop.permute.xlu0 %2601
      %2604 = vst.msk [vmem:[#allocation2 + $0x38] sm:$0xff] %vm544, %v2602
      %v2613 = vrot.slane %v327, 7
      %v2614 = vrot.slane %v332, 6
      %v2615 = vsel %vm373, %v2614, %v2613
      %v2616 = vrot.slane %v337, 5
      %v2617 = vsel %vm376, %v2616, %v2615
      %v2618 = vrot.slane %v342, 4
      %v2619 = vsel %vm379, %v2618, %v2617
      %v2620 = vrot.slane %v347, 3
      %v2621 = vsel %vm382, %v2620, %v2619
      %v2622 = vrot.slane %v352, 2
      %v2623 = vsel %vm385, %v2622, %v2621
      %v2624 = vrot.slane %v357, 1
      %v2625 = vsel %vm388, %v2624, %v2623
      %v2626 = vsel %vm391, %v362, %v2625
      %2627 = vrot.lane.b32.xlu0 %v2626, 96
      %v2628 = vpop.permute.xlu0 %2627
      %2630 = vst.msk [vmem:[#allocation2 + $0x38] sm:$0xff] %vm619, %v2628
      %v2631 = vld [vmem:[%s2] sm:$0xf]
      %v2632 = vld [vmem:[#allocation2] sm:$0xff]
      %v2633 = vld [vmem:[#allocation2 + $0x8] sm:$0xff]
      %v2634 = vld [vmem:[#allocation2 + $0x10] sm:$0xff]
      %v2635 = vld [vmem:[#allocation2 + $0x18] sm:$0xff]
      %v2636 = vld [vmem:[#allocation2 + $0x20] sm:$0xff]
      %v2637 = vld [vmem:[#allocation2 + $0x28] sm:$0xff]
      %v2638 = vld [vmem:[#allocation2 + $0x30] sm:$0xff]
      %v2639 = vld [vmem:[#allocation2 + $0x38] sm:$0xff]
      %v2640 = vpack.c.bf16 %v2632, %v2632
      %v2641 = vpack.c.bf16 %v2633, %v2633
      %v2642 = vpack.c.bf16 %v2634, %v2634
      %v2643 = vpack.c.bf16 %v2635, %v2635
      %v2644 = vpack.c.bf16 %v2636, %v2636
      %v2645 = vpack.c.bf16 %v2637, %v2637
      %v2646 = vpack.c.bf16 %v2638, %v2638
      %v2647 = vpack.c.bf16 %v2639, %v2639
      %vm2648 = vcmask 64512
      %v2650 = vsel %vm2648, %v2631, 0
      %vm2652 = vcmask 1043456
      %v2654 = vsel %vm2652, %v2640, 0
      %v2657 = vsel %vm2652, %v2641, 0
      %v2660 = vsel %vm2652, %v2642, 0
      %v2663 = vsel %vm2652, %v2643, 0
      %v2666 = vsel %vm2652, %v2644, 0
      %v2669 = vsel %vm2652, %v2645, 0
      %v2672 = vsel %vm2652, %v2646, 0
      %v2675 = vsel %vm2652, %v2647, 0
      %2677 = vmatpush.bf16.msra.mxu0 0
      %2678 = vmatpush.bf16.msra.mxu0 0
      %2679 = vmatpush.bf16.msra.mxu0 0
      %2680 = vmatpush.bf16.msra.mxu0 0
      %2681 = vmatpush.bf16.msra.mxu0 0
      %2682 = vmatpush.bf16.msra.mxu0 0
      %2683 = vmatpush.bf16.msra.mxu0 0
      %2684 = vmatpush.bf16.msra.mxu0 %v2654
      %2685 = vmatmul.bf16.gmra.mxu0 %v2650
      %v2686 = vpop.f32.mrf.mxu0
      %v2687 = vadd.f32 0.0, %v2686
      %v2688 = vpop.f32.mrf.mxu0
      %2689 = vdwg.mxu0
      %2690 = vmatpush.bf16.msra.mxu0 0
      %2691 = vmatpush.bf16.msra.mxu0 0
      %2692 = vmatpush.bf16.msra.mxu0 0
      %2693 = vmatpush.bf16.msra.mxu0 0
      %2694 = vmatpush.bf16.msra.mxu0 0
      %2695 = vmatpush.bf16.msra.mxu0 0
      %2696 = vmatpush.bf16.msra.mxu0 0
      %2697 = vmatpush.bf16.msra.mxu0 %v2657
      %2698 = vmatmul.bf16.gmra.mxu0 %v2650
      %v2699 = vpop.f32.mrf.mxu0
      %v2700 = vadd.f32 0.0, %v2699
      %v2701 = vpop.f32.mrf.mxu0
      %2702 = vdwg.mxu0
      %2703 = vmatpush.bf16.msra.mxu0 0
      %2704 = vmatpush.bf16.msra.mxu0 0
      %2705 = vmatpush.bf16.msra.mxu0 0
      %2706 = vmatpush.bf16.msra.mxu0 0
      %2707 = vmatpush.bf16.msra.mxu0 0
      %2708 = vmatpush.bf16.msra.mxu0 0
      %2709 = vmatpush.bf16.msra.mxu0 0
      %2710 = vmatpush.bf16.msra.mxu0 %v2660
      %2711 = vmatmul.bf16.gmra.mxu0 %v2650
      %v2712 = vpop.f32.mrf.mxu0
      %v2713 = vadd.f32 0.0, %v2712
      %v2714 = vpop.f32.mrf.mxu0
      %2715 = vdwg.mxu0
      %2716 = vmatpush.bf16.msra.mxu0 0
      %2717 = vmatpush.bf16.msra.mxu0 0
      %2718 = vmatpush.bf16.msra.mxu0 0
      %2719 = vmatpush.bf16.msra.mxu0 0
      %2720 = vmatpush.bf16.msra.mxu0 0
      %2721 = vmatpush.bf16.msra.mxu0 0
      %2722 = vmatpush.bf16.msra.mxu0 0
      %2723 = vmatpush.bf16.msra.mxu0 %v2663
      %2724 = vmatmul.bf16.gmra.mxu0 %v2650
      %v2725 = vpop.f32.mrf.mxu0
      %v2726 = vadd.f32 0.0, %v2725
      %v2727 = vpop.f32.mrf.mxu0
      %2728 = vdwg.mxu0
      %2729 = vmatpush.bf16.msra.mxu0 0
      %2730 = vmatpush.bf16.msra.mxu0 0
      %2731 = vmatpush.bf16.msra.mxu0 0
      %2732 = vmatpush.bf16.msra.mxu0 0
      %2733 = vmatpush.bf16.msra.mxu0 0
      %2734 = vmatpush.bf16.msra.mxu0 0
      %2735 = vmatpush.bf16.msra.mxu0 0
      %2736 = vmatpush.bf16.msra.mxu0 %v2666
      %2737 = vmatmul.bf16.gmra.mxu0 %v2650
      %v2738 = vpop.f32.mrf.mxu0
      %v2739 = vadd.f32 0.0, %v2738
      %v2740 = vpop.f32.mrf.mxu0
      %2741 = vdwg.mxu0
      %2742 = vmatpush.bf16.msra.mxu0 0
      %2743 = vmatpush.bf16.msra.mxu0 0
      %2744 = vmatpush.bf16.msra.mxu0 0
      %2745 = vmatpush.bf16.msra.mxu0 0
      %2746 = vmatpush.bf16.msra.mxu0 0
      %2747 = vmatpush.bf16.msra.mxu0 0
      %2748 = vmatpush.bf16.msra.mxu0 0
      %2749 = vmatpush.bf16.msra.mxu0 %v2669
      %2750 = vmatmul.bf16.gmra.mxu0 %v2650
      %v2751 = vpop.f32.mrf.mxu0
      %v2752 = vadd.f32 0.0, %v2751
      %v2753 = vpop.f32.mrf.mxu0
      %2754 = vdwg.mxu0
      %2755 = vmatpush.bf16.msra.mxu0 0
      %2756 = vmatpush.bf16.msra.mxu0 0
      %2757 = vmatpush.bf16.msra.mxu0 0
      %2758 = vmatpush.bf16.msra.mxu0 0
      %2759 = vmatpush.bf16.msra.mxu0 0
      %2760 = vmatpush.bf16.msra.mxu0 0
      %2761 = vmatpush.bf16.msra.mxu0 0
      %2762 = vmatpush.bf16.msra.mxu0 %v2672
      %2763 = vmatmul.bf16.gmra.mxu0 %v2650
      %v2764 = vpop.f32.mrf.mxu0
      %v2765 = vadd.f32 0.0, %v2764
      %v2766 = vpop.f32.mrf.mxu0
      %2767 = vdwg.mxu0
      %2768 = vmatpush.bf16.msra.mxu0 0
      %2769 = vmatpush.bf16.msra.mxu0 0
      %2770 = vmatpush.bf16.msra.mxu0 0
      %2771 = vmatpush.bf16.msra.mxu0 0
      %2772 = vmatpush.bf16.msra.mxu0 0
      %2773 = vmatpush.bf16.msra.mxu0 0
      %2774 = vmatpush.bf16.msra.mxu0 0
      %2775 = vmatpush.bf16.msra.mxu0 %v2675
      %2776 = vmatmul.bf16.gmra.mxu0 %v2650
      %v2777 = vpop.f32.mrf.mxu0
      %v2778 = vadd.f32 0.0, %v2777
      %v2779 = vpop.f32.mrf.mxu0
      %2780 = vdwg.mxu0
      %v2781 = vmax.f32 %v2687, 0.0
      %v2782 = vmax.f32 %v2700, 0.0
      %v2783 = vmax.f32 %v2713, 0.0
      %v2784 = vmax.f32 %v2726, 0.0
      %v2785 = vmax.f32 %v2739, 0.0
      %v2786 = vmax.f32 %v2752, 0.0
      %v2787 = vmax.f32 %v2765, 0.0
      %v2788 = vmax.f32 %v2778, 0.0
      %v2789 = vadd.f32 %v2781, %v2782
      %v2790 = vadd.f32 %v2789, %v2783
      %v2791 = vadd.f32 %v2790, %v2784
      %v2792 = vadd.f32 %v2791, %v2785
      %v2793 = vadd.f32 %v2792, %v2786
      %v2794 = vadd.f32 %v2793, %v2787
      %v2795 = vadd.f32 %v2794, %v2788
      %2796 = vadd.xlane.f32.xlu0 %v2795
      %v2797 = vpop.xlane.xlu0 %2796
      %v2798 = vmul.f32 %v2797, 0.0009765625
      %v2799 = vld [vmem:[%s3] sm:$0x3]
      %v2801 = vsel %vm2648, %v2799, 0
      %2803 = vmatpush.msra.mxu0 0.0
      %2804 = vmatpush.msra.mxu0 0.0
      %2805 = vmatpush.msra.mxu0 0.0
      %2806 = vmatpush.msra.mxu0 0.0
      %2807 = vmatpush.msra.mxu0 0.0
      %2808 = vmatpush.msra.mxu0 0.0
      %2809 = vmatpush.msra.mxu0 0.0
      %2810 = vmatpush.msra.mxu0 0.0
      %2811 = vmatpush.msra.mxu0 0.0
      %2812 = vmatpush.msra.mxu0 0.0
      %2813 = vmatpush.msra.mxu0 0.0
      %2814 = vmatpush.msra.mxu0 0.0
      %2815 = vmatpush.msra.mxu0 0.0
      %2816 = vmatpush.msra.mxu0 0.0
      %2817 = vmatpush.msra.mxu0 0.0
      %2818 = vmatpush.msra.mxu0 %v2798
      %2819 = vmatmul.f32.gmra.mxu0 %v2801
      %v2820 = vpop.f32.mrf.mxu0
      %v2821 = vadd.f32 0.0, %v2820
      %2822 = vdwg.mxu0
      %v2823 = vmax.f32 %v2821, 0.0
      %v2824 = vld [vmem:[%s4] sm:$0xff]
      %vm2825 = vcmask 15360
      %v2827 = vsel %vm2825, %v2824, 0
      %vm2829 = vcmask 1041408
      %v2831 = vsel %vm2829, %v2823, 0
      %2833 = vmatpush.msra.mxu0 0.0
      %2834 = vmatpush.msra.mxu0 0.0
      %2835 = vmatpush.msra.mxu0 0.0
      %2836 = vmatpush.msra.mxu0 0.0
      %2837 = vmatpush.msra.mxu0 0.0
      %2838 = vmatpush.msra.mxu0 0.0
      %2839 = vmatpush.msra.mxu0 0.0
      %2840 = vmatpush.msra.mxu0 0.0
      %2841 = vmatpush.msra.mxu0 0.0
      %2842 = vmatpush.msra.mxu0 0.0
      %2843 = vmatpush.msra.mxu0 0.0
      %2844 = vmatpush.msra.mxu0 0.0
      %2845 = vmatpush.msra.mxu0 0.0
      %2846 = vmatpush.msra.mxu0 0.0
      %2847 = vmatpush.msra.mxu0 0.0
      %2848 = vmatpush.msra.mxu0 %v2831
      %2849 = vmatmul.f32.gmra.mxu0 %v2827
      %v2850 = vpop.f32.mrf.mxu0
      %v2851 = vadd.f32 0.0, %v2850
      %2852 = vdwg.mxu0
      %v2853 = vxor.u32 %v2851, 2147483648
      %v2854 = vmul.f32 %v2853, 1.442695
      %v2855 = vpow.pop %v2854
      %v2856 = vadd.f32 %v2855, 1.0
      %v2857 = vrcp.pop %v2856
      %v2858 = vmul.f32 %v2856, %v2857
      %v2859 = vsub.f32 1.0, %v2858
      %v2860 = vmul.f32 %v2857, %v2859
      %v2861 = vadd.f32 %v2857, %v2860
      %vm2862 = vweird.f32 %v2856
      %vm2863 = vweird.f32 %v2857
      %vm2864 = vmor %vm2862, %vm2863
      %v2865 = vsel %vm2864, %v2857, %v2861
      %v2866 = vand.u32 2147483647, %v2856
      %vm2867 = vcmp.eq.f32.partialorder %v2866, 8.507059e+37
      %v2868 = vand.u32 %v2856, 2147483648
      %v2869 = vor.u32 1.1754944e-38, %v2868
      %v2870 = vsel %vm2867, %v2869, %v2865
      %v2871 = vmul.f32 1.0, %v2870
      %2873 = vset.pattern.permute.xlu0 0
      %2874 = vperm.xlu0 %2873, %v2871
      %v2875 = vpop.permute.xlu0 %2874
      %v2877 = vmul.f32 %v2781, %v2875
      %v2878 = vmul.f32 %v2782, %v2875
      %v2879 = vmul.f32 %v2783, %v2875
      %v2880 = vmul.f32 %v2784, %v2875
      %v2881 = vmul.f32 %v2785, %v2875
      %v2882 = vmul.f32 %v2786, %v2875
      %v2883 = vmul.f32 %v2787, %v2875
      %v2884 = vmul.f32 %v2788, %v2875
      %2885 = vst [vmem:[%s224] sm:$0xff] %v2877
      %2886 = vst [vmem:[%s224 + $0x8] sm:$0xff] %v2878
      %2887 = vst [vmem:[%s224 + $0x10] sm:$0xff] %v2879
      %2888 = vst [vmem:[%s224 + $0x18] sm:$0xff] %v2880
      %2889 = vst [vmem:[%s224 + $0x20] sm:$0xff] %v2881
      %2890 = vst [vmem:[%s224 + $0x28] sm:$0xff] %v2882
      %2891 = vst [vmem:[%s224 + $0x30] sm:$0xff] %v2883
      %2892 = vst [vmem:[%s224 + $0x38] sm:$0xff] %v2884
      %p2893 = scmp.lt.s32.totalorder %s16, 1
      %s2894 = scalar_select %p2893, %s16, 1
      %s2895 = smul.addr %s2894, 8
      %s2896 = smul.addr %s2895, 8
      %s2897 = scalar_lea.vmem %s5, %s2896
      // Predicated region
      $region41: #{famca_single.1} parent=39 // pred_check
        %p2898 = pneg %p144
      $region42: #{famca_single.1} parent=39 // pred_check_branch
        %2900 = sbr.rel (%p2898) target = $region44
      $region43: #{famca_single.1} parent=39 // pred_region
        _
      $region44: #{famca_single.1} parent=39 // pred_fallthru
        _
    $region40: #{famca_single.1} parent=5 // pred_fallthru
      _
    %p2901 = scmp.le.s32.totalorder 2, %s11
    // Predicated region
    $region45: #{famca_single.1} parent=5 // pred_check
      %p2902 = pneg %p2901
    $region46: #{famca_single.1} parent=5 // pred_check_branch
      %2904 = sbr.rel (%p2902) target = $region48
    $region47: #{famca_single.1} parent=5 // pred_region
      %s2905 = ssub.s32 %s11, 2
      // Predicated region
      $region49: #{famca_single.1} parent=47 // pred_check
        %p2906 = pneg %p150
      $region50: #{famca_single.1} parent=47 // pred_check_branch
        %2908 = sbr.rel (%p2906) target = $region52
      $region51: #{famca_single.1} parent=47 // pred_region
        %p2909 = scmp.lt.s32.totalorder %s17, 1
        %s2910 = scalar_select %p2909, %s17, 1
        %s2911 = smul.addr %s2910, 8
        %s2912 = smul.addr %s2911, 8
        %s2913 = scalar_lea.vmem %s5, %s2912
      $region52: #{famca_single.1} parent=47 // pred_fallthru
        _
    $region48: #{famca_single.1} parent=5 // pred_fallthru
      _
  $region6: #{famca_single.1} parent=0 // loop_footer
    %s15 = sadd.s32 1, %s11
  $region7: #{famca_single.1} parent=0 // loop_footer_branch
    %10 = sbr.rel target = $region3
  $region8: #{famca_single.1} parent=0 // loop_exit
    _

</llo_original>
